<compile_context>
chip_gen: v6e
topology: v6e:2x2x1
jax: 0.10.0
libtpu: 0.0.40
codegen_flags: <defaults>
</compile_context>

<pallas_src>
import jax
import jax.numpy as jnp
from jax import lax
from jax.experimental import pallas as pl
from jax.experimental.pallas import tpu as pltpu

_LANE = 128


def _round_up(v, m):
    return ((v + m - 1) // m) * m


def _choose_graphs_per_block(batch, n_nodes):
    """Pick G so the packed node dim G*N lands near one MXU tile (~128)."""
    g = max(1, _LANE // max(n_nodes, 1))
    if batch >= 2:
        # Keep at least 2 grid steps so v7x can shard across its 2 TensorCores.
        g = min(g, -(-batch // 2))
    return max(1, min(g, batch))


def _gnn_matposconv_kernel(
    x_ref,      # (GN, Din)  mxu dtype  packed node features (G graphs)
    ea_ref,     # (GE, Fe)   mxu dtype  packed edge attributes
    src_ref,    # (GE, 1)    i32        block-diagonal source ids (pre-offset by g*N)
    dst_ref,    # (1, GE)    i32        block-diagonal destination ids
    w1x_ref,    # (Din, Dp)  mxu dtype  rows of W1 acting on x_j (cols zero-padded)
    w1e_ref,    # (Fe,  Dp)  mxu dtype  rows of W1 acting on edge_attr
    b1_ref,     # (1, Dp)    f32
    w2_ref,     # (Dp, Dp)   mxu dtype
    b2_ref,     # (1, Dp)    f32
    out_ref,    # (GN, Dp)   f32
):
    x = x_ref[...]
    ea = ea_ref[...]
    src = src_ref[...]          # (GE, 1)
    dst = dst_ref[...]          # (1, GE)
    mxu_dtype = x.dtype

    gn = x.shape[0]
    ge = ea.shape[0]

    # ---- node-side projection (hoisted): each source node's W1-projection is
    # computed once per packed block and reused by every edge sharing it. -----
    xw1 = jnp.dot(x, w1x_ref[...], preferred_element_type=jnp.float32)   # (GN, Dp) f32

    # ---- block-diagonal gather one-hot (indices already offset by g*N) ------
    gather_oh = lax.broadcasted_iota(jnp.int32, (ge, gn), 1) == src
    gather = gather_oh.astype(jnp.float32).astype(mxu_dtype)             # (GE, GN)

    # ---- first Linear of the message MLP ------------------------------------
    if gn % _LANE == 0:
        # Fused gather + edge-attr projection: one MXU matmul, K = GN + Fe.
        feat = jnp.concatenate([gather, ea], axis=1)                     # (GE, GN+Fe)
        wstack = jnp.concatenate([xw1.astype(mxu_dtype), w1e_ref[...]], axis=0)
        h = jnp.dot(feat, wstack, preferred_element_type=jnp.float32)
    else:
        # Packed node dim not lane-aligned: two dots + add (still MXU work).
        h = (jnp.dot(gather, xw1.astype(mxu_dtype),
                     preferred_element_type=jnp.float32)
             + jnp.dot(ea, w1e_ref[...], preferred_element_type=jnp.float32))
    h = jnp.maximum(h + b1_ref[...], 0.0)                                # ReLU (f32 VPU)

    # ---- second Linear of the message MLP -----------------------------------
    msg = (jnp.dot(h.astype(mxu_dtype), w2_ref[...],
                   preferred_element_type=jnp.float32)
           + b2_ref[...])                                                # (GE, Dp) f32

    # ---- scatter-add over destinations (aggr='add') --------------------------
    # One-hot built directly transposed as (GN, GE): plain (GN,GE) @ (GE,Dp)
    # MXU matmul, edges on the lane axis, no transposed-LHS contraction.
    scatter_oh = lax.broadcasted_iota(jnp.int32, (gn, ge), 0) == dst
    scatter = scatter_oh.astype(jnp.float32).astype(mxu_dtype)           # (GN, GE)
    out_ref[...] = jnp.dot(scatter, msg.astype(mxu_dtype),
                           preferred_element_type=jnp.float32)


def gnn_matposconv_forward_batched(x, edge_index, edge_attr, params, *,
                                   graphs_per_block=None,
                                   mxu_dtype=jnp.bfloat16):
    """Batched Pallas forward.

    x:          (B, N, Din)  float
    edge_index: (B, 2, E)    int
    edge_attr:  (B, E, Fe)   float
    params:     {"w1": (Din+Fe, Dout), "b1": (Dout,), "w2": (Dout, Dout), "b2": (Dout,)}
    mxu_dtype:  dtype of MXU operands (bf16 recommended on v6e/v7x,
                float32 for a bit-exact path).  Accumulation is always f32.
    returns:    (B, N, Dout) float32
    """
    B, N, Din = x.shape
    _, E, Fe = edge_attr.shape
    Dout = params["w2"].shape[1]
    Dp = _round_up(Dout, _LANE)          # lane-dense hidden / output width

    G = graphs_per_block or _choose_graphs_per_block(B, N)
    B_pad = _round_up(B, G)
    NB = B_pad // G
    GN, GE = G * N, G * E

    x = x.astype(mxu_dtype)
    edge_attr = edge_attr.astype(mxu_dtype)
    edge_index = edge_index.astype(jnp.int32)
    if B_pad != B:                       # pad batch with dummy graphs (discarded)
        pad = B_pad - B
        x = jnp.pad(x, ((0, pad), (0, 0), (0, 0)))
        edge_attr = jnp.pad(edge_attr, ((0, pad), (0, 0), (0, 0)))
        edge_index = jnp.pad(edge_index, ((0, pad), (0, 0), (0, 0)))

    # Block-diagonal packing: inside a grid block, graph g's nodes live at rows
    # [g*N, (g+1)*N), so offset its edge indices by g*N on the host.
    g_off = ((jnp.arange(B_pad, dtype=jnp.int32) % G) * N)[:, None]      # (B_pad, 1)
    src = (edge_index[:, 0, :] + g_off).reshape(NB, GE, 1)
    dst = (edge_index[:, 1, :] + g_off).reshape(NB, 1, GE)
    x_p = x.reshape(NB, GN, Din)
    ea_p = edge_attr.reshape(NB, GE, Fe)

    # Zero-pad the Dout axis of weights/biases to Dp (padded columns stay
    # exactly zero through ReLU and W2, so the result is unchanged).
    pad_c = lambda a: jnp.pad(a, [(0, 0)] * (a.ndim - 1) + [(0, Dp - a.shape[-1])])
    w1 = params["w1"].astype(jnp.float32)
    w1x = pad_c(w1[:Din]).astype(mxu_dtype)                              # (Din, Dp)
    w1e = pad_c(w1[Din:]).astype(mxu_dtype)                              # (Fe,  Dp)
    b1 = pad_c(params["b1"].reshape(1, Dout).astype(jnp.float32))        # (1, Dp)
    w2 = jnp.zeros((Dp, Dp), jnp.float32).at[:Dout, :Dout].set(
        params["w2"].astype(jnp.float32)).astype(mxu_dtype)              # (Dp, Dp)
    b2 = pad_c(params["b2"].reshape(1, Dout).astype(jnp.float32))        # (1, Dp)

    # Per-block (batch-squeezed) and grid-invariant (shared) BlockSpecs.
    batched = lambda shape: pl.BlockSpec((None,) + shape,
                                         lambda b: (b,) + (0,) * len(shape))
    shared = lambda shape: pl.BlockSpec(shape, lambda b: (0,) * len(shape))

    out_padded = pl.pallas_call(
        _gnn_matposconv_kernel,
        out_shape=jax.ShapeDtypeStruct((NB, GN, Dp), jnp.float32),
        grid=(NB,),
        in_specs=[
            batched((GN, Din)),
            batched((GE, Fe)),
            batched((GE, 1)),
            batched((1, GE)),
            shared((Din, Dp)),
            shared((Fe, Dp)),
            shared((1, Dp)),
            shared((Dp, Dp)),
            shared((1, Dp)),
        ],
        out_specs=batched((GN, Dp)),
        compiler_params=pltpu.CompilerParams(
            # Packed blocks are independent -> megacore sharding (v7x: 2 TCs).
            dimension_semantics=("parallel",),
        ),
    )(x_p, ea_p, src, dst, w1x, w1e, b1, w2, b2)

    # TODO(synk): if the padded writeback ever becomes HBM-bound at large N,
    # emit only Dout lanes (when a lane multiple) or consume the padded output
    # downstream instead of slicing here.
    return out_padded.reshape(B_pad, N, Dp)[:B, :, :Dout]


def gnn_matposconv_forward(x, edge_index, edge_attr, params, *,
                           mxu_dtype=jnp.bfloat16):
    """Single-graph forward matching the PyTorch module signature."""
    out = gnn_matposconv_forward_batched(
        x[None], edge_index[None], edge_attr[None], params, mxu_dtype=mxu_dtype)
    return out[0]


def gnn_matposconv_reference(x, edge_index, edge_attr, params):
    """Pure-JAX reference mirroring the PyTorch/PyG semantics (single graph)."""
    src, dst = edge_index[0], edge_index[1]
    x_j = x[src]
    feat = jnp.concatenate([x_j, edge_attr], axis=-1)
    h = jnp.maximum(feat @ params["w1"] + params["b1"], 0.0)
    msg = h @ params["w2"] + params["b2"]
    out = jnp.zeros((x.shape[0], params["w2"].shape[1]), jnp.float32)
    return out.at[dst].add(msg)


if __name__ == "__main__":
    # 32 graphs x 8 agents, 32-dim node features, 4-dim edge features
    # (e.g. relative pos/vel), 16 directed edges per graph, 32-dim output.
    # Auto graph packing gives G=16 (G*N = 128), grid=(2,).
    B, N, IN_DIM, EDGE_FEAT, OUT_DIM, E = 32, 8, 32, 4, 32, 16

    key = jax.random.PRNGKey(0)
    k_x, k_ea, k_ei, k_w1, k_b1, k_w2, k_b2 = jax.random.split(key, 7)

    x = jax.random.normal(k_x, (B, N, IN_DIM), jnp.float32)
    edge_attr = jax.random.normal(k_ea, (B, E, EDGE_FEAT), jnp.float32)
    edge_index = jax.random.randint(k_ei, (B, 2, E), 0, N, dtype=jnp.int32)

    # message_encoder = Linear(IN+Fe, OUT) -> ReLU -> Linear(OUT, OUT);
    # weights stored as (in, out) so forward is y = x @ W + b.
    params = {
        "w1": 0.1 * jax.random.normal(k_w1, (IN_DIM + EDGE_FEAT, OUT_DIM), jnp.float32),
        "b1": 0.1 * jax.random.normal(k_b1, (OUT_DIM,), jnp.float32),
        "w2": 0.1 * jax.random.normal(k_w2, (OUT_DIM, OUT_DIM), jnp.float32),
        "b2": 0.1 * jax.random.normal(k_b2, (OUT_DIM,), jnp.float32),
    }

    ref_b = jax.vmap(
        lambda xx, ei, ea: gnn_matposconv_reference(xx, ei, ea, params)
    )(x, edge_index, edge_attr)

    # f32 MXU path: bit-tight check of packing / block-diagonal one-hots / fusion.
    out_f32 = jax.block_until_ready(
        gnn_matposconv_forward_batched(x, edge_index, edge_attr, params,
                                       mxu_dtype=jnp.float32))
    assert out_f32.shape == (B, N, OUT_DIM)
    assert jnp.allclose(out_f32, ref_b, atol=1e-4, rtol=1e-4), \
        "f32 batched mismatch vs JAX reference"

    # bf16 MXU-operand path (recommended on v6e/v7x) - looser tolerance.
    out_bf16 = jax.block_until_ready(
        gnn_matposconv_forward_batched(x, edge_index, edge_attr, params,
                                       mxu_dtype=jnp.bfloat16))
    assert out_bf16.shape == (B, N, OUT_DIM)
    assert jnp.allclose(out_bf16, ref_b, atol=5e-2, rtol=5e-2), \
        "bf16 batched mismatch vs JAX reference"

    # Non-divisible batch exercises the padding path and the non-fused branch.
    Bs = 3
    out_s = jax.block_until_ready(
        gnn_matposconv_forward_batched(x[:Bs], edge_index[:Bs], edge_attr[:Bs],
                                       params, mxu_dtype=jnp.float32))
    assert out_s.shape == (Bs, N, OUT_DIM)
    assert jnp.allclose(out_s, ref_b[:Bs], atol=1e-4, rtol=1e-4), \
        "padded-batch mismatch vs JAX reference"

    # Single-graph wrapper (original module signature).
    out_0 = jax.block_until_ready(
        gnn_matposconv_forward(x[0], edge_index[0], edge_attr[0], params,
                               mxu_dtype=jnp.float32))
    assert out_0.shape == (N, OUT_DIM)
    assert jnp.allclose(out_0, ref_b[0], atol=1e-4, rtol=1e-4), \
        "single-graph mismatch vs JAX reference"

    print("KERNEL_OK")
</pallas_src>

<mosaic_0001>
module attributes {stable_mosaic.version = 11 : i64} {
  func.func @_gnn_matposconv_kernel(%arg0: i32, %arg1: memref<1x128x32xf32, #tpu.memory_space<vmem>>, %arg2: memref<1x256x4xf32, #tpu.memory_space<vmem>>, %arg3: memref<1x256x1xi32, #tpu.memory_space<vmem>>, %arg4: memref<1x1x256xi32, #tpu.memory_space<vmem>>, %arg5: memref<32x128xf32, #tpu.memory_space<vmem>>, %arg6: memref<4x128xf32, #tpu.memory_space<vmem>>, %arg7: memref<1x128xf32, #tpu.memory_space<vmem>>, %arg8: memref<128x128xf32, #tpu.memory_space<vmem>>, %arg9: memref<1x128xf32, #tpu.memory_space<vmem>>, %arg10: memref<1x128x128xf32, #tpu.memory_space<vmem>>) attributes {dimension_semantics = [#tpu.dimension_semantics<parallel>], iteration_bounds = array<i64: 2>, scalar_prefetch = 0 : i64, scratch_operands = 0 : i64, tpu.core_type = #tpu.core_type<tc>, window_params = [{transform_indices = @transform_0, window_bounds = array<i64: 1, 128, 32>}, {transform_indices = @transform_1, window_bounds = array<i64: 1, 256, 4>}, {transform_indices = @transform_2, window_bounds = array<i64: 1, 256, 1>}, {transform_indices = @transform_3, window_bounds = array<i64: 1, 1, 256>}, {pipeline_mode = #tpu.pipeline_mode<synchronous>, transform_indices = @transform_4, window_bounds = array<i64: 32, 128>}, {pipeline_mode = #tpu.pipeline_mode<synchronous>, transform_indices = @transform_5, window_bounds = array<i64: 4, 128>}, {pipeline_mode = #tpu.pipeline_mode<synchronous>, transform_indices = @transform_6, window_bounds = array<i64: 1, 128>}, {pipeline_mode = #tpu.pipeline_mode<synchronous>, transform_indices = @transform_7, window_bounds = array<i64: 128, 128>}, {pipeline_mode = #tpu.pipeline_mode<synchronous>, transform_indices = @transform_8, window_bounds = array<i64: 1, 128>}, {transform_indices = @transform_9, window_bounds = array<i64: 1, 128, 128>}]} {
    %c0 = arith.constant 0 : index
    %c0_0 = arith.constant 0 : index
    %c0_1 = arith.constant 0 : index
    %0 = vector.load %arg1[%c0, %c0_0, %c0_1] : memref<1x128x32xf32, #tpu.memory_space<vmem>>, vector<1x128x32xf32>
    %1 = vector.shape_cast %0 : vector<1x128x32xf32> to vector<128x32xf32>
    %c0_2 = arith.constant 0 : index
    %c0_3 = arith.constant 0 : index
    %c0_4 = arith.constant 0 : index
    %2 = vector.load %arg2[%c0_2, %c0_3, %c0_4] : memref<1x256x4xf32, #tpu.memory_space<vmem>>, vector<1x256x4xf32>
    %3 = vector.shape_cast %2 : vector<1x256x4xf32> to vector<256x4xf32>
    %c0_5 = arith.constant 0 : index
    %c0_6 = arith.constant 0 : index
    %c0_7 = arith.constant 0 : index
    %4 = vector.load %arg3[%c0_5, %c0_6, %c0_7] : memref<1x256x1xi32, #tpu.memory_space<vmem>>, vector<1x256x1xi32>
    %5 = vector.shape_cast %4 : vector<1x256x1xi32> to vector<256x1xi32>
    %c0_8 = arith.constant 0 : index
    %c0_9 = arith.constant 0 : index
    %c0_10 = arith.constant 0 : index
    %6 = vector.load %arg4[%c0_8, %c0_9, %c0_10] : memref<1x1x256xi32, #tpu.memory_space<vmem>>, vector<1x1x256xi32>
    %7 = vector.shape_cast %6 : vector<1x1x256xi32> to vector<1x256xi32>
    %c0_11 = arith.constant 0 : index
    %c0_12 = arith.constant 0 : index
    %8 = vector.load %arg5[%c0_11, %c0_12] : memref<32x128xf32, #tpu.memory_space<vmem>>, vector<32x128xf32>
    %cst = arith.constant dense<0.000000e+00> : vector<128x128xf32>
    %9 = tpu.matmul %1, %8, %cst {dimension_numbers = #tpu.dot_dimension_numbers<[1], [0], [0], [1], [0, 0, 1, 1], [], []>} : vector<128x32xf32>, vector<32x128xf32>, vector<128x128xf32> -> vector<128x128xf32>
    %10 = tpu.iota {dimensions = array<i32: 1>} : vector<256x128xi32>
    %11 = vector.broadcast %5 : vector<256x1xi32> to vector<256x128xi32>
    %12 = arith.cmpi eq, %10, %11 : vector<256x128xi32>
    %13 = arith.extui %12 : vector<256x128xi1> to vector<256x128xi32>
    %14 = arith.sitofp %13 : vector<256x128xi32> to vector<256x128xf32>
    %15 = tpu.concatenate %14, %3 in 1 : vector<256x128xf32>, vector<256x4xf32> -> vector<256x132xf32>
    %c0_13 = arith.constant 0 : index
    %c0_14 = arith.constant 0 : index
    %16 = vector.load %arg6[%c0_13, %c0_14] : memref<4x128xf32, #tpu.memory_space<vmem>>, vector<4x128xf32>
    %17 = tpu.concatenate %9, %16 in 0 : vector<128x128xf32>, vector<4x128xf32> -> vector<132x128xf32>
    %cst_15 = arith.constant dense<0.000000e+00> : vector<256x128xf32>
    %18 = tpu.matmul %15, %17, %cst_15 {dimension_numbers = #tpu.dot_dimension_numbers<[1], [0], [0], [1], [0, 0, 1, 1], [], []>} : vector<256x132xf32>, vector<132x128xf32>, vector<256x128xf32> -> vector<256x128xf32>
    %c0_16 = arith.constant 0 : index
    %c0_17 = arith.constant 0 : index
    %19 = vector.load %arg7[%c0_16, %c0_17] : memref<1x128xf32, #tpu.memory_space<vmem>>, vector<1x128xf32>
    %20 = vector.broadcast %19 : vector<1x128xf32> to vector<256x128xf32>
    %21 = arith.addf %18, %20 : vector<256x128xf32>
    %cst_18 = arith.constant 0.000000e+00 : f32
    %22 = vector.broadcast %cst_18 : f32 to vector<256x128xf32>
    %23 = arith.maximumf %21, %22 : vector<256x128xf32>
    %c0_19 = arith.constant 0 : index
    %c0_20 = arith.constant 0 : index
    %24 = vector.load %arg8[%c0_19, %c0_20] : memref<128x128xf32, #tpu.memory_space<vmem>>, vector<128x128xf32>
    %cst_21 = arith.constant dense<0.000000e+00> : vector<256x128xf32>
    %25 = tpu.matmul %23, %24, %cst_21 {dimension_numbers = #tpu.dot_dimension_numbers<[1], [0], [0], [1], [0, 0, 1, 1], [], []>} : vector<256x128xf32>, vector<128x128xf32>, vector<256x128xf32> -> vector<256x128xf32>
    %c0_22 = arith.constant 0 : index
    %c0_23 = arith.constant 0 : index
    %26 = vector.load %arg9[%c0_22, %c0_23] : memref<1x128xf32, #tpu.memory_space<vmem>>, vector<1x128xf32>
    %27 = vector.broadcast %26 : vector<1x128xf32> to vector<256x128xf32>
    %28 = arith.addf %25, %27 : vector<256x128xf32>
    %29 = tpu.iota {dimensions = array<i32: 0>} : vector<128x256xi32>
    %30 = vector.broadcast %7 : vector<1x256xi32> to vector<128x256xi32>
    %31 = arith.cmpi eq, %29, %30 : vector<128x256xi32>
    %32 = arith.extui %31 : vector<128x256xi1> to vector<128x256xi32>
    %33 = arith.sitofp %32 : vector<128x256xi32> to vector<128x256xf32>
    %cst_24 = arith.constant dense<0.000000e+00> : vector<128x128xf32>
    %34 = tpu.matmul %33, %28, %cst_24 {dimension_numbers = #tpu.dot_dimension_numbers<[1], [0], [0], [1], [0, 0, 1, 1], [], []>} : vector<128x256xf32>, vector<256x128xf32>, vector<128x128xf32> -> vector<128x128xf32>
    %c0_25 = arith.constant 0 : index
    %c0_26 = arith.constant 0 : index
    %c0_27 = arith.constant 0 : index
    %35 = vector.load %arg10[%c0_25, %c0_26, %c0_27] : memref<1x128x128xf32, #tpu.memory_space<vmem>>, vector<1x128x128xf32>
    %36 = vector.shape_cast %35 : vector<1x128x128xf32> to vector<128x128xf32>
    %37 = vector.shape_cast %34 : vector<128x128xf32> to vector<1x128x128xf32>
    tpu.vector_store %arg10[%c0_25, %c0_26, %c0_27], %37 {strides = array<i32>} : memref<1x128x128xf32, #tpu.memory_space<vmem>>, vector<1x128x128xf32>,
    return
  }
  func.func @transform_0(%arg0: i32) -> (i32, i32, i32) {
    %c0_i32 = arith.constant 0 : i32
    %c0_i32_0 = arith.constant 0 : i32
    %c0_i32_1 = arith.constant 0 : i32
    return %arg0, %c0_i32, %c0_i32_0 : i32, i32, i32
  }
  func.func @transform_1(%arg0: i32) -> (i32, i32, i32) {
    %c0_i32 = arith.constant 0 : i32
    %c0_i32_0 = arith.constant 0 : i32
    %c0_i32_1 = arith.constant 0 : i32
    return %arg0, %c0_i32, %c0_i32_0 : i32, i32, i32
  }
  func.func @transform_2(%arg0: i32) -> (i32, i32, i32) {
    %c0_i32 = arith.constant 0 : i32
    %c0_i32_0 = arith.constant 0 : i32
    %c0_i32_1 = arith.constant 0 : i32
    return %arg0, %c0_i32, %c0_i32_0 : i32, i32, i32
  }
  func.func @transform_3(%arg0: i32) -> (i32, i32, i32) {
    %c0_i32 = arith.constant 0 : i32
    %c0_i32_0 = arith.constant 0 : i32
    %c0_i32_1 = arith.constant 0 : i32
    return %arg0, %c0_i32, %c0_i32_0 : i32, i32, i32
  }
  func.func @transform_4(%arg0: i32) -> (i32, i32) {
    %c0_i32 = arith.constant 0 : i32
    %c0_i32_0 = arith.constant 0 : i32
    %c0_i32_1 = arith.constant 0 : i32
    return %c0_i32, %c0_i32_0 : i32, i32
  }
  func.func @transform_5(%arg0: i32) -> (i32, i32) {
    %c0_i32 = arith.constant 0 : i32
    %c0_i32_0 = arith.constant 0 : i32
    %c0_i32_1 = arith.constant 0 : i32
    return %c0_i32, %c0_i32_0 : i32, i32
  }
  func.func @transform_6(%arg0: i32) -> (i32, i32) {
    %c0_i32 = arith.constant 0 : i32
    %c0_i32_0 = arith.constant 0 : i32
    %c0_i32_1 = arith.constant 0 : i32
    return %c0_i32, %c0_i32_0 : i32, i32
  }
  func.func @transform_7(%arg0: i32) -> (i32, i32) {
    %c0_i32 = arith.constant 0 : i32
    %c0_i32_0 = arith.constant 0 : i32
    %c0_i32_1 = arith.constant 0 : i32
    return %c0_i32, %c0_i32_0 : i32, i32
  }
  func.func @transform_8(%arg0: i32) -> (i32, i32) {
    %c0_i32 = arith.constant 0 : i32
    %c0_i32_0 = arith.constant 0 : i32
    %c0_i32_1 = arith.constant 0 : i32
    return %c0_i32, %c0_i32_0 : i32, i32
  }
  func.func @transform_9(%arg0: i32) -> (i32, i32, i32) {
    %c0_i32 = arith.constant 0 : i32
    %c0_i32_0 = arith.constant 0 : i32
    %c0_i32_1 = arith.constant 0 : i32
    return %arg0, %c0_i32, %c0_i32_0 : i32, i32, i32
  }
}

</mosaic_0001>

<llo_original>
// kernel: tpu_custom_call.1
$region0: #{tpu_custom_call.1}
  #allocation0 [shape = 'u32[]', space=smem, size = 0x4, offset = 0x4, fixed_abs, tag = 'smem constant byte address 0x4 - core index']
  #allocation1 [shape = 'u32[144,128]{1,0:T(1,128)}', space=vmem, size = 0x12000, scoped, tag = 'internal scratch']
  %s0 = inlined_call_operand.vmem [shape: f32[2,128,32], index: 0, kind: input, shape index: {}]
  %s1 = inlined_call_operand.vmem [shape: f32[2,256,4], index: 1, kind: input, shape index: {}]
  %s2 = inlined_call_operand.vmem [shape: s32[2,256,1], index: 2, kind: input, shape index: {}]
  %s3 = inlined_call_operand.vmem [shape: s32[2,1,256], index: 3, kind: input, shape index: {}]
  %s4 = inlined_call_operand.vmem [shape: f32[32,128], index: 4, kind: input, shape index: {}]
  %s5 = inlined_call_operand.vmem [shape: f32[4,128], index: 5, kind: input, shape index: {}]
  %s6 = inlined_call_operand.vmem [shape: f32[1,128], index: 6, kind: input, shape index: {}]
  %s7 = inlined_call_operand.vmem [shape: f32[128,128], index: 7, kind: input, shape index: {}]
  %s8 = inlined_call_operand.vmem [shape: f32[1,128], index: 8, kind: input, shape index: {}]
  %s9 = inlined_call_operand.hbm [shape: f32[2,128,128], index: 9, kind: output, shape index: {}]
  %s10 = sld [smem:[#allocation0]]
  $region69: #{tpu_custom_call.1} parent=0
    _
  %s12 = ssub.s32 1, %s10
  %s13 = scalar_select 0, %s12, %s10
  $region1: #{tpu_custom_call.1} parent=0
    #allocation2 [shape = 'u8[131072]{0}', space=vmem, size = 0x20000, scoped, tag = 'output window, operand 0']
    #allocation3 [shape = 's32[2]{0}', space=sflag, size = 0x8, scoped, tag = 'scoped memory for tpu_custom_call.1']
    %14 = vsyncpa [#allocation3], 0
    %s15 = scalar_lea.sflag [#allocation3], 1
    %16 = vsyncpa %s15, 0
    loop: start=0, step=1, limit=4
    $region2: #{tpu_custom_call.1} parent=1 // loop_pre_header
      _
    $region3: #{tpu_custom_call.1} parent=1 // loop_header
      %s18 = sphi 0, %s22
      %p19 = scmp.ge.s32.totalorder %s18, 4
      %s28 = sphi 0, %s30
      %s31 = sphi 0, %s28
      %s32 = sphi 0, %s31
      %s48 = sphi 0, %s32
      %s54 = sphi 0, %s56
      %s57 = sphi 0, %s54
      %s58 = sphi 0, %s57
      %s74 = sphi 0, %s58
      %s80 = sphi 0, %s82
      %s83 = sphi 0, %s80
      %s84 = sphi 0, %s83
      %s100 = sphi 0, %s84
      %s106 = sphi 0, %s108
      %s109 = sphi 0, %s106
      %s110 = sphi 0, %s109
      %s126 = sphi 0, %s110
      %s130 = sphi 0, %s130
      %s132 = sphi 0, %s130
      %s133 = sphi 0, %s132
      %s147 = sphi 0, %s133
      %s151 = sphi 0, %s151
      %s153 = sphi 0, %s151
      %s154 = sphi 0, %s153
      %s168 = sphi 0, %s154
      %s172 = sphi 0, %s172
      %s174 = sphi 0, %s172
      %s175 = sphi 0, %s174
      %s189 = sphi 0, %s175
      %s193 = sphi 0, %s193
      %s195 = sphi 0, %s193
      %s196 = sphi 0, %s195
      %s210 = sphi 0, %s196
      %s214 = sphi 0, %s214
      %s216 = sphi 0, %s214
      %s217 = sphi 0, %s216
      %s231 = sphi 0, %s217
      %s237 = sphi 0, %s239
      %s240 = sphi 0, %s237
      %s241 = sphi 0, %s240
      %s257 = sphi 0, %s241
    $region4: #{tpu_custom_call.1} parent=1 // loop_header_branch
      %21 = sbr.rel (%p19) target = $region8
    $region5: #{tpu_custom_call.1} parent=1 // loop_body
      %s23 = ssub.s32 %s18, 1
      %s24 = ssub.s32 %s18, 2
      %s25 = sadd.s32 %s18, 1
      %s26 = ssub.s32 %s18, %s25
      %p27 = scmp.eq.s32.totalorder %s26, 0
      %s29 = sadd.s32 %s28, 1
      %s30 = scalar_select %p27, %s28, %s29
      %p33 = pneg %p27
      %p34 = scmp.eq.s32.totalorder %s18, 1
      %p35 = por %p33, %p34
      %p36 = scmp.ne.s32.totalorder %s28, %s31
      %p37 = scmp.eq.s32.totalorder %s18, 0
      %p38 = por %p36, %p37
      %p39 = scmp.ne.s32.totalorder %s28, %s31
      %p40 = scmp.eq.s32.totalorder %s23, 1
      %p41 = por %p39, %p40
      %p42 = scmp.ne.s32.totalorder %s31, %s32
      %p43 = scmp.eq.s32.totalorder %s23, 0
      %p44 = por %p42, %p43
      %p45 = scmp.ne.s32.totalorder %s31, %s32
      %p46 = scmp.eq.s32.totalorder %s24, 1
      %p47 = por %p45, %p46
      %p49 = scmp.ne.s32.totalorder %s32, %s48
      %p50 = scmp.eq.s32.totalorder %s24, 0
      %p51 = por %p49, %p50
      %s52 = ssub.s32 %s18, %s25
      %p53 = scmp.eq.s32.totalorder %s52, 0
      %s55 = sadd.s32 %s54, 1
      %s56 = scalar_select %p53, %s54, %s55
      %p59 = pneg %p53
      %p60 = scmp.eq.s32.totalorder %s18, 1
      %p61 = por %p59, %p60
      %p62 = scmp.ne.s32.totalorder %s54, %s57
      %p63 = scmp.eq.s32.totalorder %s18, 0
      %p64 = por %p62, %p63
      %p65 = scmp.ne.s32.totalorder %s54, %s57
      %p66 = scmp.eq.s32.totalorder %s23, 1
      %p67 = por %p65, %p66
      %p68 = scmp.ne.s32.totalorder %s57, %s58
      %p69 = scmp.eq.s32.totalorder %s23, 0
      %p70 = por %p68, %p69
      %p71 = scmp.ne.s32.totalorder %s57, %s58
      %p72 = scmp.eq.s32.totalorder %s24, 1
      %p73 = por %p71, %p72
      %p75 = scmp.ne.s32.totalorder %s58, %s74
      %p76 = scmp.eq.s32.totalorder %s24, 0
      %p77 = por %p75, %p76
      %s78 = ssub.s32 %s18, %s25
      %p79 = scmp.eq.s32.totalorder %s78, 0
      %s81 = sadd.s32 %s80, 1
      %s82 = scalar_select %p79, %s80, %s81
      %p85 = pneg %p79
      %p86 = scmp.eq.s32.totalorder %s18, 1
      %p87 = por %p85, %p86
      %p88 = scmp.ne.s32.totalorder %s80, %s83
      %p89 = scmp.eq.s32.totalorder %s18, 0
      %p90 = por %p88, %p89
      %p91 = scmp.ne.s32.totalorder %s80, %s83
      %p92 = scmp.eq.s32.totalorder %s23, 1
      %p93 = por %p91, %p92
      %p94 = scmp.ne.s32.totalorder %s83, %s84
      %p95 = scmp.eq.s32.totalorder %s23, 0
      %p96 = por %p94, %p95
      %p97 = scmp.ne.s32.totalorder %s83, %s84
      %p98 = scmp.eq.s32.totalorder %s24, 1
      %p99 = por %p97, %p98
      %p101 = scmp.ne.s32.totalorder %s84, %s100
      %p102 = scmp.eq.s32.totalorder %s24, 0
      %p103 = por %p101, %p102
      %s104 = ssub.s32 %s18, %s25
      %p105 = scmp.eq.s32.totalorder %s104, 0
      %s107 = sadd.s32 %s106, 1
      %s108 = scalar_select %p105, %s106, %s107
      %p111 = pneg %p105
      %p112 = scmp.eq.s32.totalorder %s18, 1
      %p113 = por %p111, %p112
      %p114 = scmp.ne.s32.totalorder %s106, %s109
      %p115 = scmp.eq.s32.totalorder %s18, 0
      %p116 = por %p114, %p115
      %p117 = scmp.ne.s32.totalorder %s106, %s109
      %p118 = scmp.eq.s32.totalorder %s23, 1
      %p119 = por %p117, %p118
      %p120 = scmp.ne.s32.totalorder %s109, %s110
      %p121 = scmp.eq.s32.totalorder %s23, 0
      %p122 = por %p120, %p121
      %p123 = scmp.ne.s32.totalorder %s109, %s110
      %p124 = scmp.eq.s32.totalorder %s24, 1
      %p125 = por %p123, %p124
      %p127 = scmp.ne.s32.totalorder %s110, %s126
      %p128 = scmp.eq.s32.totalorder %s24, 0
      %p129 = por %p127, %p128
      %s131 = sadd.s32 %s130, 1
      %p134 = scmp.eq.s32.totalorder %s18, 1
      %p135 = scmp.ne.s32.totalorder %s130, %s132
      %p136 = scmp.eq.s32.totalorder %s18, 0
      %p137 = por %p135, %p136
      %p138 = scmp.ne.s32.totalorder %s130, %s132
      %p139 = scmp.eq.s32.totalorder %s23, 1
      %p140 = por %p138, %p139
      %p141 = scmp.ne.s32.totalorder %s132, %s133
      %p142 = scmp.eq.s32.totalorder %s23, 0
      %p143 = por %p141, %p142
      %p144 = scmp.ne.s32.totalorder %s132, %s133
      %p145 = scmp.eq.s32.totalorder %s24, 1
      %p146 = por %p144, %p145
      %p148 = scmp.ne.s32.totalorder %s133, %s147
      %p149 = scmp.eq.s32.totalorder %s24, 0
      %p150 = por %p148, %p149
      %s152 = sadd.s32 %s151, 1
      %p155 = scmp.eq.s32.totalorder %s18, 1
      %p156 = scmp.ne.s32.totalorder %s151, %s153
      %p157 = scmp.eq.s32.totalorder %s18, 0
      %p158 = por %p156, %p157
      %p159 = scmp.ne.s32.totalorder %s151, %s153
      %p160 = scmp.eq.s32.totalorder %s23, 1
      %p161 = por %p159, %p160
      %p162 = scmp.ne.s32.totalorder %s153, %s154
      %p163 = scmp.eq.s32.totalorder %s23, 0
      %p164 = por %p162, %p163
      %p165 = scmp.ne.s32.totalorder %s153, %s154
      %p166 = scmp.eq.s32.totalorder %s24, 1
      %p167 = por %p165, %p166
      %p169 = scmp.ne.s32.totalorder %s154, %s168
      %p170 = scmp.eq.s32.totalorder %s24, 0
      %p171 = por %p169, %p170
      %s173 = sadd.s32 %s172, 1
      %p176 = scmp.eq.s32.totalorder %s18, 1
      %p177 = scmp.ne.s32.totalorder %s172, %s174
      %p178 = scmp.eq.s32.totalorder %s18, 0
      %p179 = por %p177, %p178
      %p180 = scmp.ne.s32.totalorder %s172, %s174
      %p181 = scmp.eq.s32.totalorder %s23, 1
      %p182 = por %p180, %p181
      %p183 = scmp.ne.s32.totalorder %s174, %s175
      %p184 = scmp.eq.s32.totalorder %s23, 0
      %p185 = por %p183, %p184
      %p186 = scmp.ne.s32.totalorder %s174, %s175
      %p187 = scmp.eq.s32.totalorder %s24, 1
      %p188 = por %p186, %p187
      %p190 = scmp.ne.s32.totalorder %s175, %s189
      %p191 = scmp.eq.s32.totalorder %s24, 0
      %p192 = por %p190, %p191
      %s194 = sadd.s32 %s193, 1
      %p197 = scmp.eq.s32.totalorder %s18, 1
      %p198 = scmp.ne.s32.totalorder %s193, %s195
      %p199 = scmp.eq.s32.totalorder %s18, 0
      %p200 = por %p198, %p199
      %p201 = scmp.ne.s32.totalorder %s193, %s195
      %p202 = scmp.eq.s32.totalorder %s23, 1
      %p203 = por %p201, %p202
      %p204 = scmp.ne.s32.totalorder %s195, %s196
      %p205 = scmp.eq.s32.totalorder %s23, 0
      %p206 = por %p204, %p205
      %p207 = scmp.ne.s32.totalorder %s195, %s196
      %p208 = scmp.eq.s32.totalorder %s24, 1
      %p209 = por %p207, %p208
      %p211 = scmp.ne.s32.totalorder %s196, %s210
      %p212 = scmp.eq.s32.totalorder %s24, 0
      %p213 = por %p211, %p212
      %s215 = sadd.s32 %s214, 1
      %p218 = scmp.eq.s32.totalorder %s18, 1
      %p219 = scmp.ne.s32.totalorder %s214, %s216
      %p220 = scmp.eq.s32.totalorder %s18, 0
      %p221 = por %p219, %p220
      %p222 = scmp.ne.s32.totalorder %s214, %s216
      %p223 = scmp.eq.s32.totalorder %s23, 1
      %p224 = por %p222, %p223
      %p225 = scmp.ne.s32.totalorder %s216, %s217
      %p226 = scmp.eq.s32.totalorder %s23, 0
      %p227 = por %p225, %p226
      %p228 = scmp.ne.s32.totalorder %s216, %s217
      %p229 = scmp.eq.s32.totalorder %s24, 1
      %p230 = por %p228, %p229
      %p232 = scmp.ne.s32.totalorder %s217, %s231
      %p233 = scmp.eq.s32.totalorder %s24, 0
      %p234 = por %p232, %p233
      %s235 = ssub.s32 %s18, %s25
      %p236 = scmp.eq.s32.totalorder %s235, 0
      %s238 = sadd.s32 %s237, 1
      %s239 = scalar_select %p236, %s237, %s238
      %p242 = pneg %p236
      %p243 = scmp.eq.s32.totalorder %s18, 1
      %p244 = por %p242, %p243
      %p245 = scmp.ne.s32.totalorder %s237, %s240
      %p246 = scmp.eq.s32.totalorder %s18, 0
      %p247 = por %p245, %p246
      %p248 = scmp.ne.s32.totalorder %s237, %s240
      %p249 = scmp.eq.s32.totalorder %s23, 1
      %p250 = por %p248, %p249
      %p251 = scmp.ne.s32.totalorder %s240, %s241
      %p252 = scmp.eq.s32.totalorder %s23, 0
      %p253 = por %p251, %p252
      %p254 = scmp.ne.s32.totalorder %s240, %s241
      %p255 = scmp.eq.s32.totalorder %s24, 1
      %p256 = por %p254, %p255
      %p258 = scmp.ne.s32.totalorder %s241, %s257
      %p259 = scmp.eq.s32.totalorder %s24, 0
      %p260 = por %p258, %p259
      %p261 = scmp.le.s32.totalorder 1, %s18
      %p262 = scmp.lt.s32.totalorder %s18, 3
      %p263 = pnand %p261, %p262
      %p264 = pneg %p263
      // Predicated region
      $region9: #{tpu_custom_call.1} parent=5 // pred_check
        _
      $region10: #{tpu_custom_call.1} parent=5 // pred_check_branch
        %266 = sbr.rel (%p263) target = $region12
      $region11: #{tpu_custom_call.1} parent=5 // pred_region
        %s267 = ssub.s32 %s18, 1
        // Predicated region
        $region13: #{tpu_custom_call.1} parent=11 // pred_check
          %p268 = pneg %p143
        $region14: #{tpu_custom_call.1} parent=11 // pred_check_branch
          %270 = sbr.rel (%p268) target = $region16
        $region15: #{tpu_custom_call.1} parent=11 // pred_region
          _
        $region16: #{tpu_custom_call.1} parent=11 // pred_fallthru
          _
        // Predicated region
        $region17: #{tpu_custom_call.1} parent=11 // pred_check
          %p271 = pneg %p164
        $region18: #{tpu_custom_call.1} parent=11 // pred_check_branch
          %273 = sbr.rel (%p271) target = $region20
        $region19: #{tpu_custom_call.1} parent=11 // pred_region
          _
        $region20: #{tpu_custom_call.1} parent=11 // pred_fallthru
          _
        // Predicated region
        $region21: #{tpu_custom_call.1} parent=11 // pred_check
          %p274 = pneg %p185
        $region22: #{tpu_custom_call.1} parent=11 // pred_check_branch
          %276 = sbr.rel (%p274) target = $region24
        $region23: #{tpu_custom_call.1} parent=11 // pred_region
          _
        $region24: #{tpu_custom_call.1} parent=11 // pred_fallthru
          _
        // Predicated region
        $region25: #{tpu_custom_call.1} parent=11 // pred_check
          %p277 = pneg %p206
        $region26: #{tpu_custom_call.1} parent=11 // pred_check_branch
          %279 = sbr.rel (%p277) target = $region28
        $region27: #{tpu_custom_call.1} parent=11 // pred_region
          _
        $region28: #{tpu_custom_call.1} parent=11 // pred_fallthru
          _
        // Predicated region
        $region29: #{tpu_custom_call.1} parent=11 // pred_check
          %p280 = pneg %p227
        $region30: #{tpu_custom_call.1} parent=11 // pred_check_branch
          %282 = sbr.rel (%p280) target = $region32
        $region31: #{tpu_custom_call.1} parent=11 // pred_region
          _
        $region32: #{tpu_custom_call.1} parent=11 // pred_fallthru
          _
      $region12: #{tpu_custom_call.1} parent=5 // pred_fallthru
        _
      %p283 = scmp.lt.s32.totalorder %s18, 2
      // Predicated region
      $region33: #{tpu_custom_call.1} parent=5 // pred_check
        %p284 = pneg %p283
      $region34: #{tpu_custom_call.1} parent=5 // pred_check_branch
        %286 = sbr.rel (%p284) target = $region36
      $region35: #{tpu_custom_call.1} parent=5 // pred_region
        // Predicated region
        $region37: #{tpu_custom_call.1} parent=35 // pred_check
          %p287 = pneg %p38
        $region38: #{tpu_custom_call.1} parent=35 // pred_check_branch
          %289 = sbr.rel (%p287) target = $region40
        $region39: #{tpu_custom_call.1} parent=35 // pred_region
          %p290 = scmp.lt.s32.totalorder %s18, 1
          %s291 = scalar_select %p290, %s18, 1
          %s292 = smul.addr %s291, 16
          %s293 = smul.addr %s292, 8
          %s294 = scalar_lea.vmem %s0, %s293
        $region40: #{tpu_custom_call.1} parent=35 // pred_fallthru
          _
        // Predicated region
        $region41: #{tpu_custom_call.1} parent=35 // pred_check
          %p295 = pneg %p64
        $region42: #{tpu_custom_call.1} parent=35 // pred_check_branch
          %297 = sbr.rel (%p295) target = $region44
        $region43: #{tpu_custom_call.1} parent=35 // pred_region
          %p298 = scmp.lt.s32.totalorder %s18, 1
          %s299 = scalar_select %p298, %s18, 1
          %s300 = smul.addr %s299, 32
          %s301 = smul.addr %s300, 8
          %s302 = scalar_lea.vmem %s1, %s301
        $region44: #{tpu_custom_call.1} parent=35 // pred_fallthru
          _
        // Predicated region
        $region45: #{tpu_custom_call.1} parent=35 // pred_check
          %p303 = pneg %p90
        $region46: #{tpu_custom_call.1} parent=35 // pred_check_branch
          %305 = sbr.rel (%p303) target = $region48
        $region47: #{tpu_custom_call.1} parent=35 // pred_region
          %p306 = scmp.lt.s32.totalorder %s18, 1
          %s307 = scalar_select %p306, %s18, 1
          %s308 = smul.addr %s307, 32
          %s309 = smul.addr %s308, 8
          %s310 = scalar_lea.vmem %s2, %s309
        $region48: #{tpu_custom_call.1} parent=35 // pred_fallthru
          _
        // Predicated region
        $region49: #{tpu_custom_call.1} parent=35 // pred_check
          %p311 = pneg %p116
        $region50: #{tpu_custom_call.1} parent=35 // pred_check_branch
          %313 = sbr.rel (%p311) target = $region52
        $region51: #{tpu_custom_call.1} parent=35 // pred_region
          %p314 = scmp.lt.s32.totalorder %s18, 1
          %s315 = scalar_select %p314, %s18, 1
          %s316 = smul.addr %s315, 2
          %s317 = scalar_lea.vmem %s3, %s316
        $region52: #{tpu_custom_call.1} parent=35 // pred_fallthru
          _
      $region36: #{tpu_custom_call.1} parent=5 // pred_fallthru
        _
      %p318 = scmp.le.s32.totalorder 1, %s18
      %p319 = scmp.lt.s32.totalorder %s18, 3
      %p320 = pnand %p318, %p319
      %p321 = pneg %p320
      // Predicated region
      $region53: #{tpu_custom_call.1} parent=5 // pred_check
        _
      $region54: #{tpu_custom_call.1} parent=5 // pred_check_branch
        %323 = sbr.rel (%p320) target = $region56
      $region55: #{tpu_custom_call.1} parent=5 // pred_region
        %s324 = ssub.s32 %s18, 1
        %p325 = scmp.lt.s32.totalorder %s23, 1
        %s326 = scalar_select %p325, %s23, 1
        %s327 = smul.addr %s326, 16
        %s328 = smul.addr %s327, 8
        %s329 = scalar_lea.vmem %s0, %s328
        %p330 = pneg %p44
        %p331 = pneg %p41
        %p332 = scmp.lt.s32.totalorder %s23, 1
        %s333 = scalar_select %p332, %s23, 1
        %s334 = smul.addr %s333, 32
        %s335 = smul.addr %s334, 8
        %s336 = scalar_lea.vmem %s1, %s335
        %p337 = pneg %p70
        %p338 = pneg %p67
        %p339 = scmp.lt.s32.totalorder %s23, 1
        %s340 = scalar_select %p339, %s23, 1
        %s341 = smul.addr %s340, 32
        %s342 = smul.addr %s341, 8
        %s343 = scalar_lea.vmem %s2, %s342
        %p344 = pneg %p96
        %p345 = pneg %p93
        %p346 = scmp.lt.s32.totalorder %s23, 1
        %s347 = scalar_select %p346, %s23, 1
        %s348 = smul.addr %s347, 2
        %s349 = scalar_lea.vmem %s3, %s348
        %p350 = pneg %p122
        %p351 = pneg %p119
        %p352 = pneg %p143
        %p353 = pneg %p140
        %p354 = pneg %p164
        %p355 = pneg %p161
        %p356 = pneg %p185
        %p357 = pneg %p182
        %p358 = pneg %p206
        %p359 = pneg %p203
        %p360 = pneg %p227
        %p361 = pneg %p224
        %p362 = pneg %p253
        %p363 = pneg %p250
        %s364 = sand.u32 %s240, 1
        %s365 = scalar_lea.sflag [#allocation3], %s364
        %s366 = sand.u32 %s240, 1
        %s367 = smul.addr %s366, 128
        %s368 = scalar_lea.vmem [#allocation2], %s367
        %p369 = scmp.lt.s32.totalorder %s23, 1
        %s370 = scalar_select %p369, %s23, 1
        %s371 = smul.addr %s370, 16
        %s372 = smul.addr %s371, 8
        %s373 = scalar_lea.vmem %s0, %s372
        %p374 = scmp.lt.s32.totalorder %s23, 1
        %s375 = scalar_select %p374, %s23, 1
        %s376 = smul.addr %s375, 32
        %s377 = smul.addr %s376, 8
        %s378 = scalar_lea.vmem %s1, %s377
        %p379 = scmp.lt.s32.totalorder %s23, 1
        %s380 = scalar_select %p379, %s23, 1
        %s381 = smul.addr %s380, 32
        %s382 = smul.addr %s381, 8
        %s383 = scalar_lea.vmem %s2, %s382
        %p384 = scmp.lt.s32.totalorder %s23, 1
        %s385 = scalar_select %p384, %s23, 1
        %s386 = smul.addr %s385, 2
        %s387 = scalar_lea.vmem %s3, %s386
        %v388 = vld [vmem:[%s373] sm:$0xff]
        %v389 = vld [vmem:[%s373 + $0x8] sm:$0xff]
        %v390 = vld [vmem:[%s373 + $0x10] sm:$0xff]
        %v391 = vld [vmem:[%s373 + $0x18] sm:$0xff]
        %v392 = vld [vmem:[%s373 + $0x20] sm:$0xff]
        %v393 = vld [vmem:[%s373 + $0x28] sm:$0xff]
        %v394 = vld [vmem:[%s373 + $0x30] sm:$0xff]
        %v395 = vld [vmem:[%s373 + $0x38] sm:$0xff]
        %v396 = vld [vmem:[%s373 + $0x40] sm:$0xff]
        %v397 = vld [vmem:[%s373 + $0x48] sm:$0xff]
        %v398 = vld [vmem:[%s373 + $0x50] sm:$0xff]
        %v399 = vld [vmem:[%s373 + $0x58] sm:$0xff]
        %v400 = vld [vmem:[%s373 + $0x60] sm:$0xff]
        %v401 = vld [vmem:[%s373 + $0x68] sm:$0xff]
        %v402 = vld [vmem:[%s373 + $0x70] sm:$0xff]
        %v403 = vld [vmem:[%s373 + $0x78] sm:$0xff]
        %v404 = vld [vmem:[%s378] sm:$0xff]
        %v405 = vld [vmem:[%s378 + $0x8] sm:$0xff]
        %v406 = vld [vmem:[%s378 + $0x10] sm:$0xff]
        %v407 = vld [vmem:[%s378 + $0x18] sm:$0xff]
        %v408 = vld [vmem:[%s378 + $0x20] sm:$0xff]
        %v409 = vld [vmem:[%s378 + $0x28] sm:$0xff]
        %v410 = vld [vmem:[%s378 + $0x30] sm:$0xff]
        %v411 = vld [vmem:[%s378 + $0x38] sm:$0xff]
        %v412 = vld [vmem:[%s378 + $0x40] sm:$0xff]
        %v413 = vld [vmem:[%s378 + $0x48] sm:$0xff]
        %v414 = vld [vmem:[%s378 + $0x50] sm:$0xff]
        %v415 = vld [vmem:[%s378 + $0x58] sm:$0xff]
        %v416 = vld [vmem:[%s378 + $0x60] sm:$0xff]
        %v417 = vld [vmem:[%s378 + $0x68] sm:$0xff]
        %v418 = vld [vmem:[%s378 + $0x70] sm:$0xff]
        %v419 = vld [vmem:[%s378 + $0x78] sm:$0xff]
        %v420 = vld [vmem:[%s378 + $0x80] sm:$0xff]
        %v421 = vld [vmem:[%s378 + $0x88] sm:$0xff]
        %v422 = vld [vmem:[%s378 + $0x90] sm:$0xff]
        %v423 = vld [vmem:[%s378 + $0x98] sm:$0xff]
        %v424 = vld [vmem:[%s378 + $0xa0] sm:$0xff]
        %v425 = vld [vmem:[%s378 + $0xa8] sm:$0xff]
        %v426 = vld [vmem:[%s378 + $0xb0] sm:$0xff]
        %v427 = vld [vmem:[%s378 + $0xb8] sm:$0xff]
        %v428 = vld [vmem:[%s378 + $0xc0] sm:$0xff]
        %v429 = vld [vmem:[%s378 + $0xc8] sm:$0xff]
        %v430 = vld [vmem:[%s378 + $0xd0] sm:$0xff]
        %v431 = vld [vmem:[%s378 + $0xd8] sm:$0xff]
        %v432 = vld [vmem:[%s378 + $0xe0] sm:$0xff]
        %v433 = vld [vmem:[%s378 + $0xe8] sm:$0xff]
        %v434 = vld [vmem:[%s378 + $0xf0] sm:$0xff]
        %v435 = vld [vmem:[%s378 + $0xf8] sm:$0xff]
        %v436 = vld [vmem:[%s383] sm:$0xff]
        %v437 = vld [vmem:[%s383 + $0x8] sm:$0xff]
        %v438 = vld [vmem:[%s383 + $0x10] sm:$0xff]
        %v439 = vld [vmem:[%s383 + $0x18] sm:$0xff]
        %v440 = vld [vmem:[%s383 + $0x20] sm:$0xff]
        %v441 = vld [vmem:[%s383 + $0x28] sm:$0xff]
        %v442 = vld [vmem:[%s383 + $0x30] sm:$0xff]
        %v443 = vld [vmem:[%s383 + $0x38] sm:$0xff]
        %v444 = vld [vmem:[%s383 + $0x40] sm:$0xff]
        %v445 = vld [vmem:[%s383 + $0x48] sm:$0xff]
        %v446 = vld [vmem:[%s383 + $0x50] sm:$0xff]
        %v447 = vld [vmem:[%s383 + $0x58] sm:$0xff]
        %v448 = vld [vmem:[%s383 + $0x60] sm:$0xff]
        %v449 = vld [vmem:[%s383 + $0x68] sm:$0xff]
        %v450 = vld [vmem:[%s383 + $0x70] sm:$0xff]
        %v451 = vld [vmem:[%s383 + $0x78] sm:$0xff]
        %v452 = vld [vmem:[%s383 + $0x80] sm:$0xff]
        %v453 = vld [vmem:[%s383 + $0x88] sm:$0xff]
        %v454 = vld [vmem:[%s383 + $0x90] sm:$0xff]
        %v455 = vld [vmem:[%s383 + $0x98] sm:$0xff]
        %v456 = vld [vmem:[%s383 + $0xa0] sm:$0xff]
        %v457 = vld [vmem:[%s383 + $0xa8] sm:$0xff]
        %v458 = vld [vmem:[%s383 + $0xb0] sm:$0xff]
        %v459 = vld [vmem:[%s383 + $0xb8] sm:$0xff]
        %v460 = vld [vmem:[%s383 + $0xc0] sm:$0xff]
        %v461 = vld [vmem:[%s383 + $0xc8] sm:$0xff]
        %v462 = vld [vmem:[%s383 + $0xd0] sm:$0xff]
        %v463 = vld [vmem:[%s383 + $0xd8] sm:$0xff]
        %v464 = vld [vmem:[%s383 + $0xe0] sm:$0xff]
        %v465 = vld [vmem:[%s383 + $0xe8] sm:$0xff]
        %v466 = vld [vmem:[%s383 + $0xf0] sm:$0xff]
        %v467 = vld [vmem:[%s383 + $0xf8] sm:$0xff]
        %v468 = vld [vmem:[%s387] sm:$0x3]
        %v469 = vld [vmem:[%s4] sm:$0xff]
        %v470 = vld [vmem:[%s4 + $0x8] sm:$0xff]
        %v471 = vld [vmem:[%s4 + $0x10] sm:$0xff]
        %v472 = vld [vmem:[%s4 + $0x18] sm:$0xff]
        %vm473 = vcmask 261120
        %v475 = vsel %vm473, %v388, 0
        %v478 = vsel %vm473, %v389, 0
        %v481 = vsel %vm473, %v390, 0
        %v484 = vsel %vm473, %v391, 0
        %v487 = vsel %vm473, %v392, 0
        %v490 = vsel %vm473, %v393, 0
        %v493 = vsel %vm473, %v394, 0
        %v496 = vsel %vm473, %v395, 0
        %v499 = vsel %vm473, %v396, 0
        %v502 = vsel %vm473, %v397, 0
        %v505 = vsel %vm473, %v398, 0
        %v508 = vsel %vm473, %v399, 0
        %v511 = vsel %vm473, %v400, 0
        %v514 = vsel %vm473, %v401, 0
        %v517 = vsel %vm473, %v402, 0
        %v520 = vsel %vm473, %v403, 0
        %522 = vmatprep.subr.mxu0 0.0
        %523 = vmatpush1.msra.mxu0 0.0
        %524 = vmatprep.subr.mxu0 0.0
        %525 = vmatpush1.msra.mxu0 0.0
        %526 = vmatprep.subr.mxu0 0.0
        %527 = vmatpush1.msra.mxu0 0.0
        %528 = vmatprep.subr.mxu0 0.0
        %529 = vmatpush1.msra.mxu0 0.0
        %530 = vmatprep.subr.mxu0 0.0
        %531 = vmatpush1.msra.mxu0 0.0
        %532 = vmatprep.subr.mxu0 0.0
        %533 = vmatpush1.msra.mxu0 0.0
        %534 = vmatprep.subr.mxu0 0.0
        %535 = vmatpush1.msra.mxu0 0.0
        %536 = vmatprep.subr.mxu0 0.0
        %537 = vmatpush1.msra.mxu0 0.0
        %538 = vmatprep.subr.mxu0 0.0
        %539 = vmatpush1.msra.mxu0 0.0
        %540 = vmatprep.subr.mxu0 0.0
        %541 = vmatpush1.msra.mxu0 0.0
        %542 = vmatprep.subr.mxu0 0.0
        %543 = vmatpush1.msra.mxu0 0.0
        %544 = vmatprep.subr.mxu0 0.0
        %545 = vmatpush1.msra.mxu0 0.0
        %546 = vmatprep.subr.mxu0 0.0
        %547 = vmatpush1.msra.mxu0 %v472
        %548 = vmatprep.subr.mxu0 0.0
        %549 = vmatpush1.msra.mxu0 %v471
        %550 = vmatprep.subr.mxu0 0.0
        %551 = vmatpush1.msra.mxu0 %v470
        %552 = vmatprep.subr.mxu0 0.0
        %553 = vmatpush1.msra.mxu0 %v469
        %554 = vmatprep.subr.mxu0 0.0
        %555 = vmatpush2.msra.mxu0 0.0
        %556 = vmatprep.subr.mxu0 0.0
        %557 = vmatpush2.msra.mxu0 0.0
        %558 = vmatprep.subr.mxu0 0.0
        %559 = vmatpush2.msra.mxu0 0.0
        %560 = vmatprep.subr.mxu0 0.0
        %561 = vmatpush2.msra.mxu0 0.0
        %562 = vmatprep.subr.mxu0 0.0
        %563 = vmatpush2.msra.mxu0 0.0
        %564 = vmatprep.subr.mxu0 0.0
        %565 = vmatpush2.msra.mxu0 0.0
        %566 = vmatprep.subr.mxu0 0.0
        %567 = vmatpush2.msra.mxu0 0.0
        %568 = vmatprep.subr.mxu0 0.0
        %569 = vmatpush2.msra.mxu0 0.0
        %570 = vmatprep.subr.mxu0 0.0
        %571 = vmatpush2.msra.mxu0 0.0
        %572 = vmatprep.subr.mxu0 0.0
        %573 = vmatpush2.msra.mxu0 0.0
        %574 = vmatprep.subr.mxu0 0.0
        %575 = vmatpush2.msra.mxu0 0.0
        %576 = vmatprep.subr.mxu0 0.0
        %577 = vmatpush2.msra.mxu0 0.0
        %578 = vmatprep.subr.mxu0 0.0
        %579 = vmatpush2.msra.mxu0 0.0
        %580 = vmatprep.subr.mxu0 0.0
        %581 = vmatpush2.msra.mxu0 0.0
        %582 = vmatprep.subr.mxu0 0.0
        %583 = vmatpush2.msra.mxu0 0.0
        %584 = vmatprep.subr.mxu0 0.0
        %585 = vmatpush2.msra.mxu0 0.0
        %586 = vmatprep.mubr.f32.mxu0 0.0
        %587 = vmatmul.mubr.f32.gmra.mxu0 %v475
        %v588 = vpop.f32.mrf.mxu0
        %v589 = vadd.f32 0.0, %v588
        %v590 = vpop.f32.mrf.mxu0
        %591 = vmatprep.mubr.f32.mxu0 0.0
        %592 = vmatmul.mubr.f32.gmra.mxu0 %v478
        %v593 = vpop.f32.mrf.mxu0
        %v594 = vadd.f32 0.0, %v593
        %v595 = vpop.f32.mrf.mxu0
        %596 = vmatprep.mubr.f32.mxu0 0.0
        %597 = vmatmul.mubr.f32.gmra.mxu0 %v481
        %v598 = vpop.f32.mrf.mxu0
        %v599 = vadd.f32 0.0, %v598
        %v600 = vpop.f32.mrf.mxu0
        %601 = vmatprep.mubr.f32.mxu0 0.0
        %602 = vmatmul.mubr.f32.gmra.mxu0 %v484
        %v603 = vpop.f32.mrf.mxu0
        %v604 = vadd.f32 0.0, %v603
        %v605 = vpop.f32.mrf.mxu0
        %606 = vmatprep.mubr.f32.mxu0 0.0
        %607 = vmatmul.mubr.f32.gmra.mxu0 %v487
        %v608 = vpop.f32.mrf.mxu0
        %v609 = vadd.f32 0.0, %v608
        %v610 = vpop.f32.mrf.mxu0
        %611 = vmatprep.mubr.f32.mxu0 0.0
        %612 = vmatmul.mubr.f32.gmra.mxu0 %v490
        %v613 = vpop.f32.mrf.mxu0
        %v614 = vadd.f32 0.0, %v613
        %v615 = vpop.f32.mrf.mxu0
        %616 = vmatprep.mubr.f32.mxu0 0.0
        %617 = vmatmul.mubr.f32.gmra.mxu0 %v493
        %v618 = vpop.f32.mrf.mxu0
        %v619 = vadd.f32 0.0, %v618
        %v620 = vpop.f32.mrf.mxu0
        %621 = vmatprep.mubr.f32.mxu0 0.0
        %622 = vmatmul.mubr.f32.gmra.mxu0 %v496
        %v623 = vpop.f32.mrf.mxu0
        %v624 = vadd.f32 0.0, %v623
        %v625 = vpop.f32.mrf.mxu0
        %626 = vmatprep.mubr.f32.mxu0 0.0
        %627 = vmatmul.mubr.f32.gmra.mxu0 %v499
        %v628 = vpop.f32.mrf.mxu0
        %v629 = vadd.f32 0.0, %v628
        %v630 = vpop.f32.mrf.mxu0
        %631 = vmatprep.mubr.f32.mxu0 0.0
        %632 = vmatmul.mubr.f32.gmra.mxu0 %v502
        %v633 = vpop.f32.mrf.mxu0
        %v634 = vadd.f32 0.0, %v633
        %v635 = vpop.f32.mrf.mxu0
        %636 = vmatprep.mubr.f32.mxu0 0.0
        %637 = vmatmul.mubr.f32.gmra.mxu0 %v505
        %v638 = vpop.f32.mrf.mxu0
        %v639 = vadd.f32 0.0, %v638
        %v640 = vpop.f32.mrf.mxu0
        %641 = vmatprep.mubr.f32.mxu0 0.0
        %642 = vmatmul.mubr.f32.gmra.mxu0 %v508
        %v643 = vpop.f32.mrf.mxu0
        %v644 = vadd.f32 0.0, %v643
        %v645 = vpop.f32.mrf.mxu0
        %646 = vmatprep.mubr.f32.mxu0 0.0
        %647 = vmatmul.mubr.f32.gmra.mxu0 %v511
        %v648 = vpop.f32.mrf.mxu0
        %v649 = vadd.f32 0.0, %v648
        %v650 = vpop.f32.mrf.mxu0
        %651 = vmatprep.mubr.f32.mxu0 0.0
        %652 = vmatmul.mubr.f32.gmra.mxu0 %v514
        %v653 = vpop.f32.mrf.mxu0
        %v654 = vadd.f32 0.0, %v653
        %v655 = vpop.f32.mrf.mxu0
        %656 = vmatprep.mubr.f32.mxu0 0.0
        %657 = vmatmul.mubr.f32.gmra.mxu0 %v517
        %v658 = vpop.f32.mrf.mxu0
        %v659 = vadd.f32 0.0, %v658
        %v660 = vpop.f32.mrf.mxu0
        %661 = vmatprep.mubr.f32.mxu0 0.0
        %662 = vmatmul.mubr.f32.gmra.mxu0 %v520
        %v663 = vpop.f32.mrf.mxu0
        %v664 = vadd.f32 0.0, %v663
        %v665 = vpop.f32.mrf.mxu0
        %666 = vdwg.mxu0
        %v667 = vlaneseq
        %v668 = vand.u32 %v667, 127
        %669 = vset.pattern.permute.xlu0 0
        %670 = vperm.xlu0 %669, %v436
        %v671 = vpop.permute.xlu0 %670
        %672 = vset.pattern.permute.xlu0 0
        %673 = vperm.xlu0 %672, %v437
        %v674 = vpop.permute.xlu0 %673
        %675 = vset.pattern.permute.xlu0 0
        %676 = vperm.xlu0 %675, %v438
        %v677 = vpop.permute.xlu0 %676
        %678 = vset.pattern.permute.xlu0 0
        %679 = vperm.xlu0 %678, %v439
        %v680 = vpop.permute.xlu0 %679
        %681 = vset.pattern.permute.xlu0 0
        %682 = vperm.xlu0 %681, %v440
        %v683 = vpop.permute.xlu0 %682
        %684 = vset.pattern.permute.xlu0 0
        %685 = vperm.xlu0 %684, %v441
        %v686 = vpop.permute.xlu0 %685
        %687 = vset.pattern.permute.xlu0 0
        %688 = vperm.xlu0 %687, %v442
        %v689 = vpop.permute.xlu0 %688
        %690 = vset.pattern.permute.xlu0 0
        %691 = vperm.xlu0 %690, %v443
        %v692 = vpop.permute.xlu0 %691
        %693 = vset.pattern.permute.xlu0 0
        %694 = vperm.xlu0 %693, %v444
        %v695 = vpop.permute.xlu0 %694
        %696 = vset.pattern.permute.xlu0 0
        %697 = vperm.xlu0 %696, %v445
        %v698 = vpop.permute.xlu0 %697
        %699 = vset.pattern.permute.xlu0 0
        %700 = vperm.xlu0 %699, %v446
        %v701 = vpop.permute.xlu0 %700
        %702 = vset.pattern.permute.xlu0 0
        %703 = vperm.xlu0 %702, %v447
        %v704 = vpop.permute.xlu0 %703
        %705 = vset.pattern.permute.xlu0 0
        %706 = vperm.xlu0 %705, %v448
        %v707 = vpop.permute.xlu0 %706
        %708 = vset.pattern.permute.xlu0 0
        %709 = vperm.xlu0 %708, %v449
        %v710 = vpop.permute.xlu0 %709
        %711 = vset.pattern.permute.xlu0 0
        %712 = vperm.xlu0 %711, %v450
        %v713 = vpop.permute.xlu0 %712
        %714 = vset.pattern.permute.xlu0 0
        %715 = vperm.xlu0 %714, %v451
        %v716 = vpop.permute.xlu0 %715
        %717 = vset.pattern.permute.xlu0 0
        %718 = vperm.xlu0 %717, %v452
        %v719 = vpop.permute.xlu0 %718
        %720 = vset.pattern.permute.xlu0 0
        %721 = vperm.xlu0 %720, %v453
        %v722 = vpop.permute.xlu0 %721
        %723 = vset.pattern.permute.xlu0 0
        %724 = vperm.xlu0 %723, %v454
        %v725 = vpop.permute.xlu0 %724
        %726 = vset.pattern.permute.xlu0 0
        %727 = vperm.xlu0 %726, %v455
        %v728 = vpop.permute.xlu0 %727
        %729 = vset.pattern.permute.xlu0 0
        %730 = vperm.xlu0 %729, %v456
        %v731 = vpop.permute.xlu0 %730
        %732 = vset.pattern.permute.xlu0 0
        %733 = vperm.xlu0 %732, %v457
        %v734 = vpop.permute.xlu0 %733
        %735 = vset.pattern.permute.xlu0 0
        %736 = vperm.xlu0 %735, %v458
        %v737 = vpop.permute.xlu0 %736
        %738 = vset.pattern.permute.xlu0 0
        %739 = vperm.xlu0 %738, %v459
        %v740 = vpop.permute.xlu0 %739
        %741 = vset.pattern.permute.xlu0 0
        %742 = vperm.xlu0 %741, %v460
        %v743 = vpop.permute.xlu0 %742
        %744 = vset.pattern.permute.xlu0 0
        %745 = vperm.xlu0 %744, %v461
        %v746 = vpop.permute.xlu0 %745
        %747 = vset.pattern.permute.xlu0 0
        %748 = vperm.xlu0 %747, %v462
        %v749 = vpop.permute.xlu0 %748
        %750 = vset.pattern.permute.xlu0 0
        %751 = vperm.xlu0 %750, %v463
        %v752 = vpop.permute.xlu0 %751
        %753 = vset.pattern.permute.xlu0 0
        %754 = vperm.xlu0 %753, %v464
        %v755 = vpop.permute.xlu0 %754
        %756 = vset.pattern.permute.xlu0 0
        %757 = vperm.xlu0 %756, %v465
        %v758 = vpop.permute.xlu0 %757
        %759 = vset.pattern.permute.xlu0 0
        %760 = vperm.xlu0 %759, %v466
        %v761 = vpop.permute.xlu0 %760
        %762 = vset.pattern.permute.xlu0 0
        %763 = vperm.xlu0 %762, %v467
        %v764 = vpop.permute.xlu0 %763
        %vm765 = vcmp.eq.s32.totalorder %v668, %v671
        %vm766 = vcmp.eq.s32.totalorder %v668, %v674
        %vm767 = vcmp.eq.s32.totalorder %v668, %v677
        %vm768 = vcmp.eq.s32.totalorder %v668, %v680
        %vm769 = vcmp.eq.s32.totalorder %v668, %v683
        %vm770 = vcmp.eq.s32.totalorder %v668, %v686
        %vm771 = vcmp.eq.s32.totalorder %v668, %v689
        %vm772 = vcmp.eq.s32.totalorder %v668, %v692
        %vm773 = vcmp.eq.s32.totalorder %v668, %v695
        %vm774 = vcmp.eq.s32.totalorder %v668, %v698
        %vm775 = vcmp.eq.s32.totalorder %v668, %v701
        %vm776 = vcmp.eq.s32.totalorder %v668, %v704
        %vm777 = vcmp.eq.s32.totalorder %v668, %v707
        %vm778 = vcmp.eq.s32.totalorder %v668, %v710
        %vm779 = vcmp.eq.s32.totalorder %v668, %v713
        %vm780 = vcmp.eq.s32.totalorder %v668, %v716
        %vm781 = vcmp.eq.s32.totalorder %v668, %v719
        %vm782 = vcmp.eq.s32.totalorder %v668, %v722
        %vm783 = vcmp.eq.s32.totalorder %v668, %v725
        %vm784 = vcmp.eq.s32.totalorder %v668, %v728
        %vm785 = vcmp.eq.s32.totalorder %v668, %v731
        %vm786 = vcmp.eq.s32.totalorder %v668, %v734
        %vm787 = vcmp.eq.s32.totalorder %v668, %v737
        %vm788 = vcmp.eq.s32.totalorder %v668, %v740
        %vm789 = vcmp.eq.s32.totalorder %v668, %v743
        %vm790 = vcmp.eq.s32.totalorder %v668, %v746
        %vm791 = vcmp.eq.s32.totalorder %v668, %v749
        %vm792 = vcmp.eq.s32.totalorder %v668, %v752
        %vm793 = vcmp.eq.s32.totalorder %v668, %v755
        %vm794 = vcmp.eq.s32.totalorder %v668, %v758
        %vm795 = vcmp.eq.s32.totalorder %v668, %v761
        %vm796 = vcmp.eq.s32.totalorder %v668, %v764
        %v797 = vsel %vm765, 1, 0
        %v798 = vsel %vm766, 1, 0
        %v799 = vsel %vm767, 1, 0
        %v800 = vsel %vm768, 1, 0
        %v801 = vsel %vm769, 1, 0
        %v802 = vsel %vm770, 1, 0
        %v803 = vsel %vm771, 1, 0
        %v804 = vsel %vm772, 1, 0
        %v805 = vsel %vm773, 1, 0
        %v806 = vsel %vm774, 1, 0
        %v807 = vsel %vm775, 1, 0
        %v808 = vsel %vm776, 1, 0
        %v809 = vsel %vm777, 1, 0
        %v810 = vsel %vm778, 1, 0
        %v811 = vsel %vm779, 1, 0
        %v812 = vsel %vm780, 1, 0
        %v813 = vsel %vm781, 1, 0
        %v814 = vsel %vm782, 1, 0
        %v815 = vsel %vm783, 1, 0
        %v816 = vsel %vm784, 1, 0
        %v817 = vsel %vm785, 1, 0
        %v818 = vsel %vm786, 1, 0
        %v819 = vsel %vm787, 1, 0
        %v820 = vsel %vm788, 1, 0
        %v821 = vsel %vm789, 1, 0
        %v822 = vsel %vm790, 1, 0
        %v823 = vsel %vm791, 1, 0
        %v824 = vsel %vm792, 1, 0
        %v825 = vsel %vm793, 1, 0
        %v826 = vsel %vm794, 1, 0
        %v827 = vsel %vm795, 1, 0
        %v828 = vsel %vm796, 1, 0
        %v829 = vcvt.s32.f32 %v797
        %v830 = vcvt.s32.f32 %v798
        %v831 = vcvt.s32.f32 %v799
        %v832 = vcvt.s32.f32 %v800
        %v833 = vcvt.s32.f32 %v801
        %v834 = vcvt.s32.f32 %v802
        %v835 = vcvt.s32.f32 %v803
        %v836 = vcvt.s32.f32 %v804
        %v837 = vcvt.s32.f32 %v805
        %v838 = vcvt.s32.f32 %v806
        %v839 = vcvt.s32.f32 %v807
        %v840 = vcvt.s32.f32 %v808
        %v841 = vcvt.s32.f32 %v809
        %v842 = vcvt.s32.f32 %v810
        %v843 = vcvt.s32.f32 %v811
        %v844 = vcvt.s32.f32 %v812
        %v845 = vcvt.s32.f32 %v813
        %v846 = vcvt.s32.f32 %v814
        %v847 = vcvt.s32.f32 %v815
        %v848 = vcvt.s32.f32 %v816
        %v849 = vcvt.s32.f32 %v817
        %v850 = vcvt.s32.f32 %v818
        %v851 = vcvt.s32.f32 %v819
        %v852 = vcvt.s32.f32 %v820
        %v853 = vcvt.s32.f32 %v821
        %v854 = vcvt.s32.f32 %v822
        %v855 = vcvt.s32.f32 %v823
        %v856 = vcvt.s32.f32 %v824
        %v857 = vcvt.s32.f32 %v825
        %v858 = vcvt.s32.f32 %v826
        %v859 = vcvt.s32.f32 %v827
        %v860 = vcvt.s32.f32 %v828
        %v861 = vld [vmem:[%s5] sm:$0xf]
        %v862 = vld [vmem:[%s6] sm:$0x1]
        %v864 = vlaneseq
        %v865 = vshrl.u32 %v864, 7
        %v866 = vsub.s32 0, %v865
        %v867 = vrot.slane %v862, %v866
        %vm869 = vcmask 31744
        %v871 = vsel %vm869, %v404, 0
        %v874 = vsel %vm869, %v405, 0
        %v877 = vsel %vm869, %v406, 0
        %v880 = vsel %vm869, %v407, 0
        %v883 = vsel %vm869, %v408, 0
        %v886 = vsel %vm869, %v409, 0
        %v889 = vsel %vm869, %v410, 0
        %v892 = vsel %vm869, %v411, 0
        %v895 = vsel %vm869, %v412, 0
        %v898 = vsel %vm869, %v413, 0
        %v901 = vsel %vm869, %v414, 0
        %v904 = vsel %vm869, %v415, 0
        %v907 = vsel %vm869, %v416, 0
        %v910 = vsel %vm869, %v417, 0
        %v913 = vsel %vm869, %v418, 0
        %v916 = vsel %vm869, %v419, 0
        %v919 = vsel %vm869, %v420, 0
        %v922 = vsel %vm869, %v421, 0
        %v925 = vsel %vm869, %v422, 0
        %v928 = vsel %vm869, %v423, 0
        %v931 = vsel %vm869, %v424, 0
        %v934 = vsel %vm869, %v425, 0
        %v937 = vsel %vm869, %v426, 0
        %v940 = vsel %vm869, %v427, 0
        %v943 = vsel %vm869, %v428, 0
        %v946 = vsel %vm869, %v429, 0
        %v949 = vsel %vm869, %v430, 0
        %v952 = vsel %vm869, %v431, 0
        %v955 = vsel %vm869, %v432, 0
        %v958 = vsel %vm869, %v433, 0
        %v961 = vsel %vm869, %v434, 0
        %v964 = vsel %vm869, %v435, 0
        %vm966 = vcmask 1043456
        %v968 = vsel %vm966, %v861, 0
        %970 = vmatprep.subr.mxu0 0.0
        %971 = vmatpush1.msra.mxu0 %v664
        %972 = vmatprep.subr.mxu0 0.0
        %973 = vmatpush1.msra.mxu0 %v659
        %974 = vmatprep.subr.mxu0 0.0
        %975 = vmatpush1.msra.mxu0 %v654
        %976 = vmatprep.subr.mxu0 0.0
        %977 = vmatpush1.msra.mxu0 %v649
        %978 = vmatprep.subr.mxu0 0.0
        %979 = vmatpush1.msra.mxu0 %v644
        %980 = vmatprep.subr.mxu0 0.0
        %981 = vmatpush1.msra.mxu0 %v639
        %982 = vmatprep.subr.mxu0 0.0
        %983 = vmatpush1.msra.mxu0 %v634
        %984 = vmatprep.subr.mxu0 0.0
        %985 = vmatpush1.msra.mxu0 %v629
        %986 = vmatprep.subr.mxu0 0.0
        %987 = vmatpush1.msra.mxu0 %v624
        %988 = vmatprep.subr.mxu0 0.0
        %989 = vmatpush1.msra.mxu0 %v619
        %990 = vmatprep.subr.mxu0 0.0
        %991 = vmatpush1.msra.mxu0 %v614
        %992 = vmatprep.subr.mxu0 0.0
        %993 = vmatpush1.msra.mxu0 %v609
        %994 = vmatprep.subr.mxu0 0.0
        %995 = vmatpush1.msra.mxu0 %v604
        %996 = vmatprep.subr.mxu0 0.0
        %997 = vmatpush1.msra.mxu0 %v599
        %998 = vmatprep.subr.mxu0 0.0
        %999 = vmatpush1.msra.mxu0 %v594
        %1000 = vmatprep.subr.mxu0 0.0
        %1001 = vmatpush1.msra.mxu0 %v589
        %1002 = vmatprep.subr.mxu0 0.0
        %1003 = vmatpush2.msra.mxu0 0.0
        %1004 = vmatprep.subr.mxu0 0.0
        %1005 = vmatpush2.msra.mxu0 0.0
        %1006 = vmatprep.subr.mxu0 0.0
        %1007 = vmatpush2.msra.mxu0 0.0
        %1008 = vmatprep.subr.mxu0 0.0
        %1009 = vmatpush2.msra.mxu0 0.0
        %1010 = vmatprep.subr.mxu0 0.0
        %1011 = vmatpush2.msra.mxu0 0.0
        %1012 = vmatprep.subr.mxu0 0.0
        %1013 = vmatpush2.msra.mxu0 0.0
        %1014 = vmatprep.subr.mxu0 0.0
        %1015 = vmatpush2.msra.mxu0 0.0
        %1016 = vmatprep.subr.mxu0 0.0
        %1017 = vmatpush2.msra.mxu0 0.0
        %1018 = vmatprep.subr.mxu0 0.0
        %1019 = vmatpush2.msra.mxu0 0.0
        %1020 = vmatprep.subr.mxu0 0.0
        %1021 = vmatpush2.msra.mxu0 0.0
        %1022 = vmatprep.subr.mxu0 0.0
        %1023 = vmatpush2.msra.mxu0 0.0
        %1024 = vmatprep.subr.mxu0 0.0
        %1025 = vmatpush2.msra.mxu0 0.0
        %1026 = vmatprep.subr.mxu0 0.0
        %1027 = vmatpush2.msra.mxu0 0.0
        %1028 = vmatprep.subr.mxu0 0.0
        %1029 = vmatpush2.msra.mxu0 0.0
        %1030 = vmatprep.subr.mxu0 0.0
        %1031 = vmatpush2.msra.mxu0 0.0
        %1032 = vmatprep.subr.mxu0 0.0
        %1033 = vmatpush2.msra.mxu0 %v968
        %1034 = vmatprep.mubr.f32.mxu0 %v871
        %1035 = vmatmul.mubr.f32.gmra.mxu0 %v829
        %v1036 = vpop.f32.mrf.mxu0
        %v1037 = vadd.f32 %v867, %v1036
        %v1038 = vpop.f32.mrf.mxu0
        %1039 = vmatprep.mubr.f32.mxu0 %v874
        %1040 = vmatmul.mubr.f32.gmra.mxu0 %v830
        %v1041 = vpop.f32.mrf.mxu0
        %v1042 = vadd.f32 %v867, %v1041
        %v1043 = vpop.f32.mrf.mxu0
        %1044 = vmatprep.mubr.f32.mxu0 %v877
        %1045 = vmatmul.mubr.f32.gmra.mxu0 %v831
        %v1046 = vpop.f32.mrf.mxu0
        %v1047 = vadd.f32 %v867, %v1046
        %v1048 = vpop.f32.mrf.mxu0
        %1049 = vmatprep.mubr.f32.mxu0 %v880
        %1050 = vmatmul.mubr.f32.gmra.mxu0 %v832
        %v1051 = vpop.f32.mrf.mxu0
        %v1052 = vadd.f32 %v867, %v1051
        %v1053 = vpop.f32.mrf.mxu0
        %1054 = vmatprep.mubr.f32.mxu0 %v883
        %1055 = vmatmul.mubr.f32.gmra.mxu0 %v833
        %v1056 = vpop.f32.mrf.mxu0
        %v1057 = vadd.f32 %v867, %v1056
        %v1058 = vpop.f32.mrf.mxu0
        %1059 = vmatprep.mubr.f32.mxu0 %v886
        %1060 = vmatmul.mubr.f32.gmra.mxu0 %v834
        %v1061 = vpop.f32.mrf.mxu0
        %v1062 = vadd.f32 %v867, %v1061
        %v1063 = vpop.f32.mrf.mxu0
        %1064 = vmatprep.mubr.f32.mxu0 %v889
        %1065 = vmatmul.mubr.f32.gmra.mxu0 %v835
        %v1066 = vpop.f32.mrf.mxu0
        %v1067 = vadd.f32 %v867, %v1066
        %v1068 = vpop.f32.mrf.mxu0
        %1069 = vmatprep.mubr.f32.mxu0 %v892
        %1070 = vmatmul.mubr.f32.gmra.mxu0 %v836
        %v1071 = vpop.f32.mrf.mxu0
        %v1072 = vadd.f32 %v867, %v1071
        %v1073 = vpop.f32.mrf.mxu0
        %1074 = vmatprep.mubr.f32.mxu0 %v895
        %1075 = vmatmul.mubr.f32.gmra.mxu0 %v837
        %v1076 = vpop.f32.mrf.mxu0
        %v1077 = vadd.f32 %v867, %v1076
        %v1078 = vpop.f32.mrf.mxu0
        %1079 = vmatprep.mubr.f32.mxu0 %v898
        %1080 = vmatmul.mubr.f32.gmra.mxu0 %v838
        %v1081 = vpop.f32.mrf.mxu0
        %v1082 = vadd.f32 %v867, %v1081
        %v1083 = vpop.f32.mrf.mxu0
        %1084 = vmatprep.mubr.f32.mxu0 %v901
        %1085 = vmatmul.mubr.f32.gmra.mxu0 %v839
        %v1086 = vpop.f32.mrf.mxu0
        %v1087 = vadd.f32 %v867, %v1086
        %v1088 = vpop.f32.mrf.mxu0
        %1089 = vmatprep.mubr.f32.mxu0 %v904
        %1090 = vmatmul.mubr.f32.gmra.mxu0 %v840
        %v1091 = vpop.f32.mrf.mxu0
        %v1092 = vadd.f32 %v867, %v1091
        %v1093 = vpop.f32.mrf.mxu0
        %1094 = vmatprep.mubr.f32.mxu0 %v907
        %1095 = vmatmul.mubr.f32.gmra.mxu0 %v841
        %v1096 = vpop.f32.mrf.mxu0
        %v1097 = vadd.f32 %v867, %v1096
        %v1098 = vpop.f32.mrf.mxu0
        %1099 = vmatprep.mubr.f32.mxu0 %v910
        %1100 = vmatmul.mubr.f32.gmra.mxu0 %v842
        %v1101 = vpop.f32.mrf.mxu0
        %v1102 = vadd.f32 %v867, %v1101
        %v1103 = vpop.f32.mrf.mxu0
        %1104 = vmatprep.mubr.f32.mxu0 %v913
        %1105 = vmatmul.mubr.f32.gmra.mxu0 %v843
        %v1106 = vpop.f32.mrf.mxu0
        %v1107 = vadd.f32 %v867, %v1106
        %v1108 = vpop.f32.mrf.mxu0
        %1109 = vmatprep.mubr.f32.mxu0 %v916
        %1110 = vmatmul.mubr.f32.gmra.mxu0 %v844
        %v1111 = vpop.f32.mrf.mxu0
        %v1112 = vadd.f32 %v867, %v1111
        %v1113 = vpop.f32.mrf.mxu0
        %1114 = vmatprep.mubr.f32.mxu0 %v919
        %1115 = vmatmul.mubr.f32.gmra.mxu0 %v845
        %v1116 = vpop.f32.mrf.mxu0
        %v1117 = vadd.f32 %v867, %v1116
        %v1118 = vpop.f32.mrf.mxu0
        %1119 = vmatprep.mubr.f32.mxu0 %v922
        %1120 = vmatmul.mubr.f32.gmra.mxu0 %v846
        %v1121 = vpop.f32.mrf.mxu0
        %v1122 = vadd.f32 %v867, %v1121
        %v1123 = vpop.f32.mrf.mxu0
        %1124 = vmatprep.mubr.f32.mxu0 %v925
        %1125 = vmatmul.mubr.f32.gmra.mxu0 %v847
        %v1126 = vpop.f32.mrf.mxu0
        %v1127 = vadd.f32 %v867, %v1126
        %v1128 = vpop.f32.mrf.mxu0
        %1129 = vmatprep.mubr.f32.mxu0 %v928
        %1130 = vmatmul.mubr.f32.gmra.mxu0 %v848
        %v1131 = vpop.f32.mrf.mxu0
        %v1132 = vadd.f32 %v867, %v1131
        %v1133 = vpop.f32.mrf.mxu0
        %1134 = vmatprep.mubr.f32.mxu0 %v931
        %1135 = vmatmul.mubr.f32.gmra.mxu0 %v849
        %v1136 = vpop.f32.mrf.mxu0
        %v1137 = vadd.f32 %v867, %v1136
        %v1138 = vpop.f32.mrf.mxu0
        %1139 = vmatprep.mubr.f32.mxu0 %v934
        %1140 = vmatmul.mubr.f32.gmra.mxu0 %v850
        %v1141 = vpop.f32.mrf.mxu0
        %v1142 = vadd.f32 %v867, %v1141
        %v1143 = vpop.f32.mrf.mxu0
        %1144 = vmatprep.mubr.f32.mxu0 %v937
        %1145 = vmatmul.mubr.f32.gmra.mxu0 %v851
        %v1146 = vpop.f32.mrf.mxu0
        %v1147 = vadd.f32 %v867, %v1146
        %v1148 = vpop.f32.mrf.mxu0
        %1149 = vmatprep.mubr.f32.mxu0 %v940
        %1150 = vmatmul.mubr.f32.gmra.mxu0 %v852
        %v1151 = vpop.f32.mrf.mxu0
        %v1152 = vadd.f32 %v867, %v1151
        %v1153 = vpop.f32.mrf.mxu0
        %1154 = vmatprep.mubr.f32.mxu0 %v943
        %1155 = vmatmul.mubr.f32.gmra.mxu0 %v853
        %v1156 = vpop.f32.mrf.mxu0
        %v1157 = vadd.f32 %v867, %v1156
        %v1158 = vpop.f32.mrf.mxu0
        %1159 = vmatprep.mubr.f32.mxu0 %v946
        %1160 = vmatmul.mubr.f32.gmra.mxu0 %v854
        %v1161 = vpop.f32.mrf.mxu0
        %v1162 = vadd.f32 %v867, %v1161
        %v1163 = vpop.f32.mrf.mxu0
        %1164 = vmatprep.mubr.f32.mxu0 %v949
        %1165 = vmatmul.mubr.f32.gmra.mxu0 %v855
        %v1166 = vpop.f32.mrf.mxu0
        %v1167 = vadd.f32 %v867, %v1166
        %v1168 = vpop.f32.mrf.mxu0
        %1169 = vmatprep.mubr.f32.mxu0 %v952
        %1170 = vmatmul.mubr.f32.gmra.mxu0 %v856
        %v1171 = vpop.f32.mrf.mxu0
        %v1172 = vadd.f32 %v867, %v1171
        %v1173 = vpop.f32.mrf.mxu0
        %1174 = vmatprep.mubr.f32.mxu0 %v955
        %1175 = vmatmul.mubr.f32.gmra.mxu0 %v857
        %v1176 = vpop.f32.mrf.mxu0
        %v1177 = vadd.f32 %v867, %v1176
        %v1178 = vpop.f32.mrf.mxu0
        %1179 = vmatprep.mubr.f32.mxu0 %v958
        %1180 = vmatmul.mubr.f32.gmra.mxu0 %v858
        %v1181 = vpop.f32.mrf.mxu0
        %v1182 = vadd.f32 %v867, %v1181
        %v1183 = vpop.f32.mrf.mxu0
        %1184 = vmatprep.mubr.f32.mxu0 %v961
        %1185 = vmatmul.mubr.f32.gmra.mxu0 %v859
        %v1186 = vpop.f32.mrf.mxu0
        %v1187 = vadd.f32 %v867, %v1186
        %v1188 = vpop.f32.mrf.mxu0
        %1189 = vmatprep.mubr.f32.mxu0 %v964
        %1190 = vmatmul.mubr.f32.gmra.mxu0 %v860
        %v1191 = vpop.f32.mrf.mxu0
        %v1192 = vadd.f32 %v867, %v1191
        %v1193 = vpop.f32.mrf.mxu0
        %1194 = vdwg.mxu0
        %v1195 = vmax.f32 %v1037, 0.0
        %v1196 = vmax.f32 %v1042, 0.0
        %v1197 = vmax.f32 %v1047, 0.0
        %v1198 = vmax.f32 %v1052, 0.0
        %v1199 = vmax.f32 %v1057, 0.0
        %v1200 = vmax.f32 %v1062, 0.0
        %v1201 = vmax.f32 %v1067, 0.0
        %v1202 = vmax.f32 %v1072, 0.0
        %v1203 = vmax.f32 %v1077, 0.0
        %v1204 = vmax.f32 %v1082, 0.0
        %v1205 = vmax.f32 %v1087, 0.0
        %v1206 = vmax.f32 %v1092, 0.0
        %v1207 = vmax.f32 %v1097, 0.0
        %v1208 = vmax.f32 %v1102, 0.0
        %v1209 = vmax.f32 %v1107, 0.0
        %v1210 = vmax.f32 %v1112, 0.0
        %v1211 = vmax.f32 %v1117, 0.0
        %v1212 = vmax.f32 %v1122, 0.0
        %v1213 = vmax.f32 %v1127, 0.0
        %v1214 = vmax.f32 %v1132, 0.0
        %v1215 = vmax.f32 %v1137, 0.0
        %v1216 = vmax.f32 %v1142, 0.0
        %v1217 = vmax.f32 %v1147, 0.0
        %v1218 = vmax.f32 %v1152, 0.0
        %v1219 = vmax.f32 %v1157, 0.0
        %v1220 = vmax.f32 %v1162, 0.0
        %v1221 = vmax.f32 %v1167, 0.0
        %v1222 = vmax.f32 %v1172, 0.0
        %v1223 = vmax.f32 %v1177, 0.0
        %v1224 = vmax.f32 %v1182, 0.0
        %v1225 = vmax.f32 %v1187, 0.0
        %v1226 = vmax.f32 %v1192, 0.0
        %v1227 = vld [vmem:[%s7] sm:$0xff]
        %v1228 = vld [vmem:[%s7 + $0x8] sm:$0xff]
        %v1229 = vld [vmem:[%s7 + $0x10] sm:$0xff]
        %v1230 = vld [vmem:[%s7 + $0x18] sm:$0xff]
        %v1231 = vld [vmem:[%s7 + $0x20] sm:$0xff]
        %v1232 = vld [vmem:[%s7 + $0x28] sm:$0xff]
        %v1233 = vld [vmem:[%s7 + $0x30] sm:$0xff]
        %v1234 = vld [vmem:[%s7 + $0x38] sm:$0xff]
        %v1235 = vld [vmem:[%s7 + $0x40] sm:$0xff]
        %v1236 = vld [vmem:[%s7 + $0x48] sm:$0xff]
        %v1237 = vld [vmem:[%s7 + $0x50] sm:$0xff]
        %v1238 = vld [vmem:[%s7 + $0x58] sm:$0xff]
        %v1239 = vld [vmem:[%s7 + $0x60] sm:$0xff]
        %v1240 = vld [vmem:[%s7 + $0x68] sm:$0xff]
        %v1241 = vld [vmem:[%s7 + $0x70] sm:$0xff]
        %v1242 = vld [vmem:[%s7 + $0x78] sm:$0xff]
        %v1243 = vld [vmem:[%s8] sm:$0x1]
        %v1245 = vlaneseq
        %v1246 = vshrl.u32 %v1245, 7
        %v1247 = vsub.s32 0, %v1246
        %v1248 = vrot.slane %v1243, %v1247
        %1250 = vmatprep.subr.mxu0 0.0
        %1251 = vmatpush1.msra.mxu0 %v1242
        %1252 = vmatprep.subr.mxu0 0.0
        %1253 = vmatpush1.msra.mxu0 %v1241
        %1254 = vmatprep.subr.mxu0 0.0
        %1255 = vmatpush1.msra.mxu0 %v1240
        %1256 = vmatprep.subr.mxu0 0.0
        %1257 = vmatpush1.msra.mxu0 %v1239
        %1258 = vmatprep.subr.mxu0 0.0
        %1259 = vmatpush1.msra.mxu0 %v1238
        %1260 = vmatprep.subr.mxu0 0.0
        %1261 = vmatpush1.msra.mxu0 %v1237
        %1262 = vmatprep.subr.mxu0 0.0
        %1263 = vmatpush1.msra.mxu0 %v1236
        %1264 = vmatprep.subr.mxu0 0.0
        %1265 = vmatpush1.msra.mxu0 %v1235
        %1266 = vmatprep.subr.mxu0 0.0
        %1267 = vmatpush1.msra.mxu0 %v1234
        %1268 = vmatprep.subr.mxu0 0.0
        %1269 = vmatpush1.msra.mxu0 %v1233
        %1270 = vmatprep.subr.mxu0 0.0
        %1271 = vmatpush1.msra.mxu0 %v1232
        %1272 = vmatprep.subr.mxu0 0.0
        %1273 = vmatpush1.msra.mxu0 %v1231
        %1274 = vmatprep.subr.mxu0 0.0
        %1275 = vmatpush1.msra.mxu0 %v1230
        %1276 = vmatprep.subr.mxu0 0.0
        %1277 = vmatpush1.msra.mxu0 %v1229
        %1278 = vmatprep.subr.mxu0 0.0
        %1279 = vmatpush1.msra.mxu0 %v1228
        %1280 = vmatprep.subr.mxu0 0.0
        %1281 = vmatpush1.msra.mxu0 %v1227
        %1282 = vmatprep.subr.mxu0 0.0
        %1283 = vmatpush2.msra.mxu0 0.0
        %1284 = vmatprep.subr.mxu0 0.0
        %1285 = vmatpush2.msra.mxu0 0.0
        %1286 = vmatprep.subr.mxu0 0.0
        %1287 = vmatpush2.msra.mxu0 0.0
        %1288 = vmatprep.subr.mxu0 0.0
        %1289 = vmatpush2.msra.mxu0 0.0
        %1290 = vmatprep.subr.mxu0 0.0
        %1291 = vmatpush2.msra.mxu0 0.0
        %1292 = vmatprep.subr.mxu0 0.0
        %1293 = vmatpush2.msra.mxu0 0.0
        %1294 = vmatprep.subr.mxu0 0.0
        %1295 = vmatpush2.msra.mxu0 0.0
        %1296 = vmatprep.subr.mxu0 0.0
        %1297 = vmatpush2.msra.mxu0 0.0
        %1298 = vmatprep.subr.mxu0 0.0
        %1299 = vmatpush2.msra.mxu0 0.0
        %1300 = vmatprep.subr.mxu0 0.0
        %1301 = vmatpush2.msra.mxu0 0.0
        %1302 = vmatprep.subr.mxu0 0.0
        %1303 = vmatpush2.msra.mxu0 0.0
        %1304 = vmatprep.subr.mxu0 0.0
        %1305 = vmatpush2.msra.mxu0 0.0
        %1306 = vmatprep.subr.mxu0 0.0
        %1307 = vmatpush2.msra.mxu0 0.0
        %1308 = vmatprep.subr.mxu0 0.0
        %1309 = vmatpush2.msra.mxu0 0.0
        %1310 = vmatprep.subr.mxu0 0.0
        %1311 = vmatpush2.msra.mxu0 0.0
        %1312 = vmatprep.subr.mxu0 0.0
        %1313 = vmatpush2.msra.mxu0 0.0
        %1314 = vmatprep.mubr.f32.mxu0 0.0
        %1315 = vmatmul.mubr.f32.gmra.mxu0 %v1195
        %v1316 = vpop.f32.mrf.mxu0
        %v1317 = vadd.f32 %v1248, %v1316
        %v1318 = vpop.f32.mrf.mxu0
        %1319 = vmatprep.mubr.f32.mxu0 0.0
        %1320 = vmatmul.mubr.f32.gmra.mxu0 %v1196
        %v1321 = vpop.f32.mrf.mxu0
        %v1322 = vadd.f32 %v1248, %v1321
        %v1323 = vpop.f32.mrf.mxu0
        %1324 = vmatprep.mubr.f32.mxu0 0.0
        %1325 = vmatmul.mubr.f32.gmra.mxu0 %v1197
        %v1326 = vpop.f32.mrf.mxu0
        %v1327 = vadd.f32 %v1248, %v1326
        %v1328 = vpop.f32.mrf.mxu0
        %1329 = vmatprep.mubr.f32.mxu0 0.0
        %1330 = vmatmul.mubr.f32.gmra.mxu0 %v1198
        %v1331 = vpop.f32.mrf.mxu0
        %v1332 = vadd.f32 %v1248, %v1331
        %v1333 = vpop.f32.mrf.mxu0
        %1334 = vmatprep.mubr.f32.mxu0 0.0
        %1335 = vmatmul.mubr.f32.gmra.mxu0 %v1199
        %v1336 = vpop.f32.mrf.mxu0
        %v1337 = vadd.f32 %v1248, %v1336
        %v1338 = vpop.f32.mrf.mxu0
        %1339 = vmatprep.mubr.f32.mxu0 0.0
        %1340 = vmatmul.mubr.f32.gmra.mxu0 %v1200
        %v1341 = vpop.f32.mrf.mxu0
        %v1342 = vadd.f32 %v1248, %v1341
        %v1343 = vpop.f32.mrf.mxu0
        %1344 = vmatprep.mubr.f32.mxu0 0.0
        %1345 = vmatmul.mubr.f32.gmra.mxu0 %v1201
        %v1346 = vpop.f32.mrf.mxu0
        %v1347 = vadd.f32 %v1248, %v1346
        %v1348 = vpop.f32.mrf.mxu0
        %1349 = vmatprep.mubr.f32.mxu0 0.0
        %1350 = vmatmul.mubr.f32.gmra.mxu0 %v1202
        %v1351 = vpop.f32.mrf.mxu0
        %v1352 = vadd.f32 %v1248, %v1351
        %v1353 = vpop.f32.mrf.mxu0
        %1354 = vmatprep.mubr.f32.mxu0 0.0
        %1355 = vmatmul.mubr.f32.gmra.mxu0 %v1203
        %v1356 = vpop.f32.mrf.mxu0
        %v1357 = vadd.f32 %v1248, %v1356
        %v1358 = vpop.f32.mrf.mxu0
        %1359 = vmatprep.mubr.f32.mxu0 0.0
        %1360 = vmatmul.mubr.f32.gmra.mxu0 %v1204
        %v1361 = vpop.f32.mrf.mxu0
        %v1362 = vadd.f32 %v1248, %v1361
        %v1363 = vpop.f32.mrf.mxu0
        %1364 = vmatprep.mubr.f32.mxu0 0.0
        %1365 = vmatmul.mubr.f32.gmra.mxu0 %v1205
        %v1366 = vpop.f32.mrf.mxu0
        %v1367 = vadd.f32 %v1248, %v1366
        %v1368 = vpop.f32.mrf.mxu0
        %1369 = vmatprep.mubr.f32.mxu0 0.0
        %1370 = vmatmul.mubr.f32.gmra.mxu0 %v1206
        %v1371 = vpop.f32.mrf.mxu0
        %v1372 = vadd.f32 %v1248, %v1371
        %v1373 = vpop.f32.mrf.mxu0
        %1374 = vmatprep.mubr.f32.mxu0 0.0
        %1375 = vmatmul.mubr.f32.gmra.mxu0 %v1207
        %v1376 = vpop.f32.mrf.mxu0
        %v1377 = vadd.f32 %v1248, %v1376
        %v1378 = vpop.f32.mrf.mxu0
        %1379 = vmatprep.mubr.f32.mxu0 0.0
        %1380 = vmatmul.mubr.f32.gmra.mxu0 %v1208
        %v1381 = vpop.f32.mrf.mxu0
        %v1382 = vadd.f32 %v1248, %v1381
        %v1383 = vpop.f32.mrf.mxu0
        %1384 = vmatprep.mubr.f32.mxu0 0.0
        %1385 = vmatmul.mubr.f32.gmra.mxu0 %v1209
        %v1386 = vpop.f32.mrf.mxu0
        %v1387 = vadd.f32 %v1248, %v1386
        %v1388 = vpop.f32.mrf.mxu0
        %1389 = vmatprep.mubr.f32.mxu0 0.0
        %1390 = vmatmul.mubr.f32.gmra.mxu0 %v1210
        %v1391 = vpop.f32.mrf.mxu0
        %v1392 = vadd.f32 %v1248, %v1391
        %v1393 = vpop.f32.mrf.mxu0
        %1394 = vmatprep.mubr.f32.mxu0 0.0
        %1395 = vmatmul.mubr.f32.gmra.mxu0 %v1211
        %v1396 = vpop.f32.mrf.mxu0
        %v1397 = vadd.f32 %v1248, %v1396
        %v1398 = vpop.f32.mrf.mxu0
        %1399 = vmatprep.mubr.f32.mxu0 0.0
        %1400 = vmatmul.mubr.f32.gmra.mxu0 %v1212
        %v1401 = vpop.f32.mrf.mxu0
        %v1402 = vadd.f32 %v1248, %v1401
        %v1403 = vpop.f32.mrf.mxu0
        %1404 = vmatprep.mubr.f32.mxu0 0.0
        %1405 = vmatmul.mubr.f32.gmra.mxu0 %v1213
        %v1406 = vpop.f32.mrf.mxu0
        %v1407 = vadd.f32 %v1248, %v1406
        %v1408 = vpop.f32.mrf.mxu0
        %1409 = vmatprep.mubr.f32.mxu0 0.0
        %1410 = vmatmul.mubr.f32.gmra.mxu0 %v1214
        %v1411 = vpop.f32.mrf.mxu0
        %v1412 = vadd.f32 %v1248, %v1411
        %v1413 = vpop.f32.mrf.mxu0
        %1414 = vmatprep.mubr.f32.mxu0 0.0
        %1415 = vmatmul.mubr.f32.gmra.mxu0 %v1215
        %v1416 = vpop.f32.mrf.mxu0
        %v1417 = vadd.f32 %v1248, %v1416
        %v1418 = vpop.f32.mrf.mxu0
        %1419 = vmatprep.mubr.f32.mxu0 0.0
        %1420 = vmatmul.mubr.f32.gmra.mxu0 %v1216
        %v1421 = vpop.f32.mrf.mxu0
        %v1422 = vadd.f32 %v1248, %v1421
        %v1423 = vpop.f32.mrf.mxu0
        %1424 = vmatprep.mubr.f32.mxu0 0.0
        %1425 = vmatmul.mubr.f32.gmra.mxu0 %v1217
        %v1426 = vpop.f32.mrf.mxu0
        %v1427 = vadd.f32 %v1248, %v1426
        %v1428 = vpop.f32.mrf.mxu0
        %1429 = vmatprep.mubr.f32.mxu0 0.0
        %1430 = vmatmul.mubr.f32.gmra.mxu0 %v1218
        %v1431 = vpop.f32.mrf.mxu0
        %v1432 = vadd.f32 %v1248, %v1431
        %v1433 = vpop.f32.mrf.mxu0
        %1434 = vmatprep.mubr.f32.mxu0 0.0
        %1435 = vmatmul.mubr.f32.gmra.mxu0 %v1219
        %v1436 = vpop.f32.mrf.mxu0
        %v1437 = vadd.f32 %v1248, %v1436
        %v1438 = vpop.f32.mrf.mxu0
        %1439 = vmatprep.mubr.f32.mxu0 0.0
        %1440 = vmatmul.mubr.f32.gmra.mxu0 %v1220
        %v1441 = vpop.f32.mrf.mxu0
        %v1442 = vadd.f32 %v1248, %v1441
        %v1443 = vpop.f32.mrf.mxu0
        %1444 = vmatprep.mubr.f32.mxu0 0.0
        %1445 = vmatmul.mubr.f32.gmra.mxu0 %v1221
        %v1446 = vpop.f32.mrf.mxu0
        %v1447 = vadd.f32 %v1248, %v1446
        %v1448 = vpop.f32.mrf.mxu0
        %1449 = vmatprep.mubr.f32.mxu0 0.0
        %1450 = vmatmul.mubr.f32.gmra.mxu0 %v1222
        %v1451 = vpop.f32.mrf.mxu0
        %v1452 = vadd.f32 %v1248, %v1451
        %v1453 = vpop.f32.mrf.mxu0
        %1454 = vmatprep.mubr.f32.mxu0 0.0
        %1455 = vmatmul.mubr.f32.gmra.mxu0 %v1223
        %v1456 = vpop.f32.mrf.mxu0
        %v1457 = vadd.f32 %v1248, %v1456
        %v1458 = vpop.f32.mrf.mxu0
        %1459 = vmatprep.mubr.f32.mxu0 0.0
        %1460 = vmatmul.mubr.f32.gmra.mxu0 %v1224
        %v1461 = vpop.f32.mrf.mxu0
        %v1462 = vadd.f32 %v1248, %v1461
        %v1463 = vpop.f32.mrf.mxu0
        %1464 = vmatprep.mubr.f32.mxu0 0.0
        %1465 = vmatmul.mubr.f32.gmra.mxu0 %v1225
        %v1466 = vpop.f32.mrf.mxu0
        %v1467 = vadd.f32 %v1248, %v1466
        %v1468 = vpop.f32.mrf.mxu0
        %1469 = vmatprep.mubr.f32.mxu0 0.0
        %1470 = vmatmul.mubr.f32.gmra.mxu0 %v1226
        %v1471 = vpop.f32.mrf.mxu0
        %v1472 = vadd.f32 %v1248, %v1471
        %v1473 = vpop.f32.mrf.mxu0
        %1474 = vdwg.mxu0
        %v1475 = vlaneseq
        %v1476 = vshrl.u32 %v1475, 7
        %v1477 = vadd.s32 %v1476, 8
        %v1478 = vadd.s32 %v1476, 16
        %v1479 = vadd.s32 %v1476, 24
        %v1480 = vadd.s32 %v1476, 32
        %v1481 = vadd.s32 %v1476, 40
        %v1482 = vadd.s32 %v1476, 48
        %v1483 = vadd.s32 %v1476, 56
        %v1484 = vadd.s32 %v1476, 64
        %v1485 = vadd.s32 %v1476, 72
        %v1486 = vadd.s32 %v1476, 80
        %v1487 = vadd.s32 %v1476, 88
        %v1488 = vadd.s32 %v1476, 96
        %v1489 = vadd.s32 %v1476, 104
        %v1490 = vadd.s32 %v1476, 112
        %v1491 = vadd.s32 %v1476, 120
        %v1492 = vlaneseq
        %v1493 = vshrl.u32 %v1492, 7
        %v1494 = vsub.s32 0, %v1493
        %v1495 = vrot.slane %v468, %v1494
        %v1496 = vlaneseq
        %v1497 = vshrl.u32 %v1496, 7
        %v1498 = vsub.s32 1, %v1497
        %v1499 = vrot.slane %v468, %v1498
        %vm1500 = vcmp.eq.s32.totalorder %v1476, %v1495
        %vm1501 = vcmp.eq.s32.totalorder %v1476, %v1499
        %vm1502 = vcmp.eq.s32.totalorder %v1477, %v1495
        %vm1503 = vcmp.eq.s32.totalorder %v1477, %v1499
        %vm1504 = vcmp.eq.s32.totalorder %v1478, %v1495
        %vm1505 = vcmp.eq.s32.totalorder %v1478, %v1499
        %vm1506 = vcmp.eq.s32.totalorder %v1479, %v1495
        %vm1507 = vcmp.eq.s32.totalorder %v1479, %v1499
        %vm1508 = vcmp.eq.s32.totalorder %v1480, %v1495
        %vm1509 = vcmp.eq.s32.totalorder %v1480, %v1499
        %vm1510 = vcmp.eq.s32.totalorder %v1481, %v1495
        %vm1511 = vcmp.eq.s32.totalorder %v1481, %v1499
        %vm1512 = vcmp.eq.s32.totalorder %v1482, %v1495
        %vm1513 = vcmp.eq.s32.totalorder %v1482, %v1499
        %vm1514 = vcmp.eq.s32.totalorder %v1483, %v1495
        %vm1515 = vcmp.eq.s32.totalorder %v1483, %v1499
        %vm1516 = vcmp.eq.s32.totalorder %v1484, %v1495
        %vm1517 = vcmp.eq.s32.totalorder %v1484, %v1499
        %vm1518 = vcmp.eq.s32.totalorder %v1485, %v1495
        %vm1519 = vcmp.eq.s32.totalorder %v1485, %v1499
        %vm1520 = vcmp.eq.s32.totalorder %v1486, %v1495
        %vm1521 = vcmp.eq.s32.totalorder %v1486, %v1499
        %vm1522 = vcmp.eq.s32.totalorder %v1487, %v1495
        %vm1523 = vcmp.eq.s32.totalorder %v1487, %v1499
        %vm1524 = vcmp.eq.s32.totalorder %v1488, %v1495
        %vm1525 = vcmp.eq.s32.totalorder %v1488, %v1499
        %vm1526 = vcmp.eq.s32.totalorder %v1489, %v1495
        %vm1527 = vcmp.eq.s32.totalorder %v1489, %v1499
        %vm1528 = vcmp.eq.s32.totalorder %v1490, %v1495
        %vm1529 = vcmp.eq.s32.totalorder %v1490, %v1499
        %vm1530 = vcmp.eq.s32.totalorder %v1491, %v1495
        %vm1531 = vcmp.eq.s32.totalorder %v1491, %v1499
        %v1532 = vsel %vm1500, 1, 0
        %v1533 = vsel %vm1501, 1, 0
        %v1534 = vsel %vm1502, 1, 0
        %v1535 = vsel %vm1503, 1, 0
        %v1536 = vsel %vm1504, 1, 0
        %v1537 = vsel %vm1505, 1, 0
        %v1538 = vsel %vm1506, 1, 0
        %v1539 = vsel %vm1507, 1, 0
        %v1540 = vsel %vm1508, 1, 0
        %v1541 = vsel %vm1509, 1, 0
        %v1542 = vsel %vm1510, 1, 0
        %v1543 = vsel %vm1511, 1, 0
        %v1544 = vsel %vm1512, 1, 0
        %v1545 = vsel %vm1513, 1, 0
        %v1546 = vsel %vm1514, 1, 0
        %v1547 = vsel %vm1515, 1, 0
        %v1548 = vsel %vm1516, 1, 0
        %v1549 = vsel %vm1517, 1, 0
        %v1550 = vsel %vm1518, 1, 0
        %v1551 = vsel %vm1519, 1, 0
        %v1552 = vsel %vm1520, 1, 0
        %v1553 = vsel %vm1521, 1, 0
        %v1554 = vsel %vm1522, 1, 0
        %v1555 = vsel %vm1523, 1, 0
        %v1556 = vsel %vm1524, 1, 0
        %v1557 = vsel %vm1525, 1, 0
        %v1558 = vsel %vm1526, 1, 0
        %v1559 = vsel %vm1527, 1, 0
        %v1560 = vsel %vm1528, 1, 0
        %v1561 = vsel %vm1529, 1, 0
        %v1562 = vsel %vm1530, 1, 0
        %v1563 = vsel %vm1531, 1, 0
        %v1564 = vcvt.s32.f32 %v1532
        %v1565 = vcvt.s32.f32 %v1533
        %v1566 = vcvt.s32.f32 %v1534
        %v1567 = vcvt.s32.f32 %v1535
        %v1568 = vcvt.s32.f32 %v1536
        %v1569 = vcvt.s32.f32 %v1537
        %v1570 = vcvt.s32.f32 %v1538
        %v1571 = vcvt.s32.f32 %v1539
        %v1572 = vcvt.s32.f32 %v1540
        %v1573 = vcvt.s32.f32 %v1541
        %v1574 = vcvt.s32.f32 %v1542
        %v1575 = vcvt.s32.f32 %v1543
        %v1576 = vcvt.s32.f32 %v1544
        %v1577 = vcvt.s32.f32 %v1545
        %v1578 = vcvt.s32.f32 %v1546
        %v1579 = vcvt.s32.f32 %v1547
        %v1580 = vcvt.s32.f32 %v1548
        %v1581 = vcvt.s32.f32 %v1549
        %v1582 = vcvt.s32.f32 %v1550
        %v1583 = vcvt.s32.f32 %v1551
        %v1584 = vcvt.s32.f32 %v1552
        %v1585 = vcvt.s32.f32 %v1553
        %v1586 = vcvt.s32.f32 %v1554
        %v1587 = vcvt.s32.f32 %v1555
        %v1588 = vcvt.s32.f32 %v1556
        %v1589 = vcvt.s32.f32 %v1557
        %v1590 = vcvt.s32.f32 %v1558
        %v1591 = vcvt.s32.f32 %v1559
        %v1592 = vcvt.s32.f32 %v1560
        %v1593 = vcvt.s32.f32 %v1561
        %v1594 = vcvt.s32.f32 %v1562
        %v1595 = vcvt.s32.f32 %v1563
        %1596 = vmatprep.subr.mxu0 0.0
        %1597 = vmatpush1.msra.mxu0 %v1392
        %1598 = vmatprep.subr.mxu0 0.0
        %1599 = vmatpush1.msra.mxu0 %v1387
        %1600 = vmatprep.subr.mxu0 0.0
        %1601 = vmatpush1.msra.mxu0 %v1382
        %1602 = vmatprep.subr.mxu0 0.0
        %1603 = vmatpush1.msra.mxu0 %v1377
        %1604 = vmatprep.subr.mxu0 0.0
        %1605 = vmatpush1.msra.mxu0 %v1372
        %1606 = vmatprep.subr.mxu0 0.0
        %1607 = vmatpush1.msra.mxu0 %v1367
        %1608 = vmatprep.subr.mxu0 0.0
        %1609 = vmatpush1.msra.mxu0 %v1362
        %1610 = vmatprep.subr.mxu0 0.0
        %1611 = vmatpush1.msra.mxu0 %v1357
        %1612 = vmatprep.subr.mxu0 0.0
        %1613 = vmatpush1.msra.mxu0 %v1352
        %1614 = vmatprep.subr.mxu0 0.0
        %1615 = vmatpush1.msra.mxu0 %v1347
        %1616 = vmatprep.subr.mxu0 0.0
        %1617 = vmatpush1.msra.mxu0 %v1342
        %1618 = vmatprep.subr.mxu0 0.0
        %1619 = vmatpush1.msra.mxu0 %v1337
        %1620 = vmatprep.subr.mxu0 0.0
        %1621 = vmatpush1.msra.mxu0 %v1332
        %1622 = vmatprep.subr.mxu0 0.0
        %1623 = vmatpush1.msra.mxu0 %v1327
        %1624 = vmatprep.subr.mxu0 0.0
        %1625 = vmatpush1.msra.mxu0 %v1322
        %1626 = vmatprep.subr.mxu0 0.0
        %1627 = vmatpush1.msra.mxu0 %v1317
        %1628 = vmatprep.subr.mxu0 0.0
        %1629 = vmatpush2.msra.mxu0 %v1472
        %1630 = vmatprep.subr.mxu0 0.0
        %1631 = vmatpush2.msra.mxu0 %v1467
        %1632 = vmatprep.subr.mxu0 0.0
        %1633 = vmatpush2.msra.mxu0 %v1462
        %1634 = vmatprep.subr.mxu0 0.0
        %1635 = vmatpush2.msra.mxu0 %v1457
        %1636 = vmatprep.subr.mxu0 0.0
        %1637 = vmatpush2.msra.mxu0 %v1452
        %1638 = vmatprep.subr.mxu0 0.0
        %1639 = vmatpush2.msra.mxu0 %v1447
        %1640 = vmatprep.subr.mxu0 0.0
        %1641 = vmatpush2.msra.mxu0 %v1442
        %1642 = vmatprep.subr.mxu0 0.0
        %1643 = vmatpush2.msra.mxu0 %v1437
        %1644 = vmatprep.subr.mxu0 0.0
        %1645 = vmatpush2.msra.mxu0 %v1432
        %1646 = vmatprep.subr.mxu0 0.0
        %1647 = vmatpush2.msra.mxu0 %v1427
        %1648 = vmatprep.subr.mxu0 0.0
        %1649 = vmatpush2.msra.mxu0 %v1422
        %1650 = vmatprep.subr.mxu0 0.0
        %1651 = vmatpush2.msra.mxu0 %v1417
        %1652 = vmatprep.subr.mxu0 0.0
        %1653 = vmatpush2.msra.mxu0 %v1412
        %1654 = vmatprep.subr.mxu0 0.0
        %1655 = vmatpush2.msra.mxu0 %v1407
        %1656 = vmatprep.subr.mxu0 0.0
        %1657 = vmatpush2.msra.mxu0 %v1402
        %1658 = vmatprep.subr.mxu0 0.0
        %1659 = vmatpush2.msra.mxu0 %v1397
        %1660 = vmatprep.mubr.f32.mxu0 %v1565
        %1661 = vmatmul.mubr.f32.gmra.mxu0 %v1564
        %v1662 = vpop.f32.mrf.mxu0
        %v1663 = vadd.f32 0.0, %v1662
        %v1664 = vpop.f32.mrf.mxu0
        %1665 = vmatprep.mubr.f32.mxu0 %v1567
        %1666 = vmatmul.mubr.f32.gmra.mxu0 %v1566
        %v1667 = vpop.f32.mrf.mxu0
        %v1668 = vadd.f32 0.0, %v1667
        %v1669 = vpop.f32.mrf.mxu0
        %1670 = vmatprep.mubr.f32.mxu0 %v1569
        %1671 = vmatmul.mubr.f32.gmra.mxu0 %v1568
        %v1672 = vpop.f32.mrf.mxu0
        %v1673 = vadd.f32 0.0, %v1672
        %v1674 = vpop.f32.mrf.mxu0
        %1675 = vmatprep.mubr.f32.mxu0 %v1571
        %1676 = vmatmul.mubr.f32.gmra.mxu0 %v1570
        %v1677 = vpop.f32.mrf.mxu0
        %v1678 = vadd.f32 0.0, %v1677
        %v1679 = vpop.f32.mrf.mxu0
        %1680 = vmatprep.mubr.f32.mxu0 %v1573
        %1681 = vmatmul.mubr.f32.gmra.mxu0 %v1572
        %v1682 = vpop.f32.mrf.mxu0
        %v1683 = vadd.f32 0.0, %v1682
        %v1684 = vpop.f32.mrf.mxu0
        %1685 = vmatprep.mubr.f32.mxu0 %v1575
        %1686 = vmatmul.mubr.f32.gmra.mxu0 %v1574
        %v1687 = vpop.f32.mrf.mxu0
        %v1688 = vadd.f32 0.0, %v1687
        %v1689 = vpop.f32.mrf.mxu0
        %1690 = vmatprep.mubr.f32.mxu0 %v1577
        %1691 = vmatmul.mubr.f32.gmra.mxu0 %v1576
        %v1692 = vpop.f32.mrf.mxu0
        %v1693 = vadd.f32 0.0, %v1692
        %v1694 = vpop.f32.mrf.mxu0
        %1695 = vmatprep.mubr.f32.mxu0 %v1579
        %1696 = vmatmul.mubr.f32.gmra.mxu0 %v1578
        %v1697 = vpop.f32.mrf.mxu0
        %v1698 = vadd.f32 0.0, %v1697
        %v1699 = vpop.f32.mrf.mxu0
        %1700 = vmatprep.mubr.f32.mxu0 %v1581
        %1701 = vmatmul.mubr.f32.gmra.mxu0 %v1580
        %v1702 = vpop.f32.mrf.mxu0
        %v1703 = vadd.f32 0.0, %v1702
        %v1704 = vpop.f32.mrf.mxu0
        %1705 = vmatprep.mubr.f32.mxu0 %v1583
        %1706 = vmatmul.mubr.f32.gmra.mxu0 %v1582
        %v1707 = vpop.f32.mrf.mxu0
        %v1708 = vadd.f32 0.0, %v1707
        %v1709 = vpop.f32.mrf.mxu0
        %1710 = vmatprep.mubr.f32.mxu0 %v1585
        %1711 = vmatmul.mubr.f32.gmra.mxu0 %v1584
        %v1712 = vpop.f32.mrf.mxu0
        %v1713 = vadd.f32 0.0, %v1712
        %v1714 = vpop.f32.mrf.mxu0
        %1715 = vmatprep.mubr.f32.mxu0 %v1587
        %1716 = vmatmul.mubr.f32.gmra.mxu0 %v1586
        %v1717 = vpop.f32.mrf.mxu0
        %v1718 = vadd.f32 0.0, %v1717
        %v1719 = vpop.f32.mrf.mxu0
        %1720 = vmatprep.mubr.f32.mxu0 %v1589
        %1721 = vmatmul.mubr.f32.gmra.mxu0 %v1588
        %v1722 = vpop.f32.mrf.mxu0
        %v1723 = vadd.f32 0.0, %v1722
        %v1724 = vpop.f32.mrf.mxu0
        %1725 = vmatprep.mubr.f32.mxu0 %v1591
        %1726 = vmatmul.mubr.f32.gmra.mxu0 %v1590
        %v1727 = vpop.f32.mrf.mxu0
        %v1728 = vadd.f32 0.0, %v1727
        %v1729 = vpop.f32.mrf.mxu0
        %1730 = vmatprep.mubr.f32.mxu0 %v1593
        %1731 = vmatmul.mubr.f32.gmra.mxu0 %v1592
        %v1732 = vpop.f32.mrf.mxu0
        %v1733 = vadd.f32 0.0, %v1732
        %v1734 = vpop.f32.mrf.mxu0
        %1735 = vmatprep.mubr.f32.mxu0 %v1595
        %1736 = vmatmul.mubr.f32.gmra.mxu0 %v1594
        %v1737 = vpop.f32.mrf.mxu0
        %v1738 = vadd.f32 0.0, %v1737
        %v1739 = vpop.f32.mrf.mxu0
        %1740 = vdwg.mxu0
        %1741 = vst [vmem:[%s368] sm:$0xff] %v1663
        %1742 = vst [vmem:[%s368 + $0x8] sm:$0xff] %v1668
        %1743 = vst [vmem:[%s368 + $0x10] sm:$0xff] %v1673
        %1744 = vst [vmem:[%s368 + $0x18] sm:$0xff] %v1678
        %1745 = vst [vmem:[%s368 + $0x20] sm:$0xff] %v1683
        %1746 = vst [vmem:[%s368 + $0x28] sm:$0xff] %v1688
        %1747 = vst [vmem:[%s368 + $0x30] sm:$0xff] %v1693
        %1748 = vst [vmem:[%s368 + $0x38] sm:$0xff] %v1698
        %1749 = vst [vmem:[%s368 + $0x40] sm:$0xff] %v1703
        %1750 = vst [vmem:[%s368 + $0x48] sm:$0xff] %v1708
        %1751 = vst [vmem:[%s368 + $0x50] sm:$0xff] %v1713
        %1752 = vst [vmem:[%s368 + $0x58] sm:$0xff] %v1718
        %1753 = vst [vmem:[%s368 + $0x60] sm:$0xff] %v1723
        %1754 = vst [vmem:[%s368 + $0x68] sm:$0xff] %v1728
        %1755 = vst [vmem:[%s368 + $0x70] sm:$0xff] %v1733
        %1756 = vst [vmem:[%s368 + $0x78] sm:$0xff] %v1738
        %s1757 = sand.u32 %s240, 1
        %s1758 = scalar_lea.sflag [#allocation3], %s1757
        %s1759 = sand.u32 %s240, 1
        %s1760 = smul.addr %s1759, 128
        %s1761 = scalar_lea.vmem [#allocation2], %s1760
        // Predicated region
        $region57: #{tpu_custom_call.1} parent=55 // pred_check
          %p1762 = pneg %p250
        $region58: #{tpu_custom_call.1} parent=55 // pred_check_branch
          %1764 = sbr.rel (%p1762) target = $region60
        $region59: #{tpu_custom_call.1} parent=55 // pred_region
          %s1766 = ssub.s32 2048, 2048
          %1767 = vsyncadd %s1758, %s1766
          %s1768 = smul.addr %s23, 16
          %s1769 = smul.addr %s1768, 128
          %s1770 = scalar_lea.hbm %s9, %s1769
          %s1771 = sshll.u32 %s1761, 4
          %s1772 = int_to_ptr.vmem [resolvable:$true] %s1771
          %1777 = dma.vmem_to_hbm [thread:$0]  %s1772, 2048, %s1770, %s1758, 128, 128, 8
        $region60: #{tpu_custom_call.1} parent=55 // pred_fallthru
          _
      $region56: #{tpu_custom_call.1} parent=5 // pred_fallthru
        _
      %p1778 = scmp.le.s32.totalorder 2, %s18
      // Predicated region
      $region61: #{tpu_custom_call.1} parent=5 // pred_check
        %p1779 = pneg %p1778
      $region62: #{tpu_custom_call.1} parent=5 // pred_check_branch
        %1781 = sbr.rel (%p1779) target = $region64
      $region63: #{tpu_custom_call.1} parent=5 // pred_region
        %s1782 = ssub.s32 %s18, 2
        // Predicated region
        $region65: #{tpu_custom_call.1} parent=63 // pred_check
          %p1783 = pneg %p256
        $region66: #{tpu_custom_call.1} parent=63 // pred_check_branch
          %1785 = sbr.rel (%p1783) target = $region68
        $region67: #{tpu_custom_call.1} parent=63 // pred_region
          %s1786 = sand.u32 %s241, 1
          %s1787 = scalar_lea.sflag [#allocation3], %s1786
          %s1788 = sand.u32 %s241, 1
          %s1789 = smul.addr %s1788, 128
          %s1790 = scalar_lea.vmem [#allocation2], %s1789
          %1791 = dma.done %s1787, 2048
        $region68: #{tpu_custom_call.1} parent=63 // pred_fallthru
          _
      $region64: #{tpu_custom_call.1} parent=5 // pred_fallthru
        _
    $region6: #{tpu_custom_call.1} parent=1 // loop_footer
      %s22 = sadd.s32 1, %s18
    $region7: #{tpu_custom_call.1} parent=1 // loop_footer_branch
      %17 = sbr.rel target = $region3
    $region8: #{tpu_custom_call.1} parent=1 // loop_exit
      _
    %1792 = vsyncpa [#allocation3], 1
    %s1793 = scalar_lea.sflag [#allocation3], 1
    %1794 = vsyncpa %s1793, 1

</llo_original>
